<compile_context>
chip_gen: v5e
topology: v5e:2x2
jax: 0.10.0
libtpu: 0.0.40
codegen_flags: <defaults>
</compile_context>

<pallas_src>
import jax
import jax.numpy as jnp
from jax.experimental import pallas as pl
from jax.experimental.pallas import tpu as pltpu

# ----------------------------- model dims ---------------------------------
T = 8          # sequence length
B = 2          # batch
I = 16         # input_size
H = 32         # hidden_size
O = 4          # output_size
LN_EPS = 1e-5


def lstm_kernel(x_ref, wih_ref, whh_ref, b_ref, gamma_ref, beta_ref,
                wfc_ref, bfc_ref, out_ref, hs_ref):
    # ---------------- prologue (runs once, off the recurrence) -------------
    x_flat = x_ref[...]                               # (T*B, I)
    b = b_ref[...]                                    # (1, 4H)
    gamma = gamma_ref[...]                            # (1, H)
    beta = beta_ref[...]                              # (1, H)

    # Hoisted input projection for ALL timesteps: one (T*B,I)x(I,4H) matmul.
    gates_x = jnp.dot(x_flat, wih_ref[...],
                      preferred_element_type=jnp.float32) + b    # (T*B, 4H)

    # Split per-gate blocks ONCE (PyTorch order [i, f, g, o]); in-loop tensors
    # are then all (.., H) lane-aligned -> no per-step 32-lane vreg slices.
    whh = whh_ref[...]                                # (H, 4H)
    gx = [gates_x[:, k * H:(k + 1) * H] for k in range(4)]   # 4 x (T*B, H)
    wh = [whh[:, k * H:(k + 1) * H] for k in range(4)]       # 4 x (H, H)

    h = jnp.zeros((B, H), jnp.float32)
    c = jnp.zeros((B, H), jnp.float32)

    # ---------------- recurrence: fully unrolled (T = 8) -------------------
    # Only h @ W_hh_gate sits on the serial dependence chain.
    for t in range(T):
        r0 = t * B
        gi = gx[0][r0:r0 + B, :] + jnp.dot(h, wh[0], preferred_element_type=jnp.float32)
        gf = gx[1][r0:r0 + B, :] + jnp.dot(h, wh[1], preferred_element_type=jnp.float32)
        gg = gx[2][r0:r0 + B, :] + jnp.dot(h, wh[2], preferred_element_type=jnp.float32)
        go = gx[3][r0:r0 + B, :] + jnp.dot(h, wh[3], preferred_element_type=jnp.float32)

        i_g = jax.nn.sigmoid(gi)
        f_g = jax.nn.sigmoid(gf)
        g_g = jnp.tanh(gg)
        o_g = jax.nn.sigmoid(go)

        c = f_g * c + i_g * g_g
        h = o_g * jnp.tanh(c)

        hs_ref[r0:r0 + B, :] = h          # stash h_t in VMEM (off the chain)

    # -------- epilogue: batched LayerNorm -> FC -> sigmoid, one store ------
    h_all = hs_ref[...]                               # (T*B, H)
    mean = jnp.mean(h_all, axis=-1, keepdims=True)
    var = jnp.mean((h_all - mean) ** 2, axis=-1, keepdims=True)
    h_ln = (h_all - mean) * jax.lax.rsqrt(var + LN_EPS) * gamma + beta

    # Dropout is identity in eval mode.
    # TODO(synk): training-mode dropout (stochastic mask) not implemented.

    y = jnp.dot(h_ln, wfc_ref[...], preferred_element_type=jnp.float32) + bfc_ref[...]
    out_ref[...] = jax.nn.sigmoid(y)                  # single (T*B, O) store


def lstm_model_forward(x, params):
    """x: (T, B, I) float32 -> (T, B, O) float32."""
    wih, whh, b, gamma, beta, wfc, bfc = params
    x2d = x.reshape(T * B, I)                         # free reshape in XLA
    vmem = pl.BlockSpec(memory_space=pltpu.MemorySpace.VMEM)
    y2d = pl.pallas_call(
        lstm_kernel,
        out_shape=jax.ShapeDtypeStruct((T * B, O), jnp.float32),
        in_specs=[vmem] * 8,                          # whole arrays in VMEM
        out_specs=vmem,
        scratch_shapes=[pltpu.VMEM((T * B, H), jnp.float32)],  # h history
    )(x2d, wih, whh, b, gamma, beta, wfc, bfc)
    # NOTE: for real batches >2 on v7x, shard independent sequences across the
    # two TensorCores with a leading "parallel" grid axis; not needed at B=2.
    return y2d.reshape(T, B, O)


# ------------------------- pure-JAX reference ------------------------------
def reference_forward(x, params):
    wih, whh, b, gamma, beta, wfc, bfc = params
    h = jnp.zeros((B, H), jnp.float32)
    c = jnp.zeros((B, H), jnp.float32)
    outs = []
    for t in range(T):
        gates = x[t] @ wih + h @ whh + b
        i_g = jax.nn.sigmoid(gates[:, 0 * H:1 * H])
        f_g = jax.nn.sigmoid(gates[:, 1 * H:2 * H])
        g_g = jnp.tanh(gates[:, 2 * H:3 * H])
        o_g = jax.nn.sigmoid(gates[:, 3 * H:4 * H])
        c = f_g * c + i_g * g_g
        h = o_g * jnp.tanh(c)
        mean = jnp.mean(h, axis=-1, keepdims=True)
        var = jnp.mean((h - mean) ** 2, axis=-1, keepdims=True)
        h_ln = (h - mean) * jax.lax.rsqrt(var + LN_EPS) * gamma + beta
        outs.append(jax.nn.sigmoid(h_ln @ wfc + bfc))
    return jnp.stack(outs, axis=0)


def init_params(key):
    """Deterministic init mimicking PyTorch's U(-1/sqrt(H), 1/sqrt(H))."""
    ks = jax.random.split(key, 8)
    s = 1.0 / jnp.sqrt(H)
    wih = jax.random.uniform(ks[0], (I, 4 * H), jnp.float32, -s, s)   # W_ih^T
    whh = jax.random.uniform(ks[1], (H, 4 * H), jnp.float32, -s, s)   # W_hh^T
    b_ih = jax.random.uniform(ks[2], (4 * H,), jnp.float32, -s, s)
    b_hh = jax.random.uniform(ks[3], (4 * H,), jnp.float32, -s, s)
    b = (b_ih + b_hh).reshape(1, 4 * H)
    gamma = jnp.ones((1, H), jnp.float32)
    beta = jnp.zeros((1, H), jnp.float32)
    sf = 1.0 / jnp.sqrt(H)
    wfc = jax.random.uniform(ks[4], (H, O), jnp.float32, -sf, sf)     # fc W^T
    bfc = jax.random.uniform(ks[5], (1, O), jnp.float32, -sf, sf)
    return (wih, whh, b, gamma, beta, wfc, bfc)


if __name__ == "__main__":
    key = jax.random.PRNGKey(0)
    k_x, k_p = jax.random.split(key)
    x = jax.random.normal(k_x, (T, B, I), jnp.float32)
    params = init_params(k_p)

    out = jax.block_until_ready(lstm_model_forward(x, params))
    ref = jax.block_until_ready(reference_forward(x, params))

    assert out.shape == (T, B, O), out.shape
    assert jnp.allclose(out, ref, atol=3e-5, rtol=1e-5), \
        float(jnp.max(jnp.abs(out - ref)))
    print("KERNEL_OK")
</pallas_src>

<mosaic_0001>
module attributes {stable_mosaic.version = 11 : i64} {
  func.func @lstm_kernel(%arg0: memref<16x16xf32, #tpu.memory_space<vmem>>, %arg1: memref<16x128xf32, #tpu.memory_space<vmem>>, %arg2: memref<32x128xf32, #tpu.memory_space<vmem>>, %arg3: memref<1x128xf32, #tpu.memory_space<vmem>>, %arg4: memref<1x32xf32, #tpu.memory_space<vmem>>, %arg5: memref<1x32xf32, #tpu.memory_space<vmem>>, %arg6: memref<32x4xf32, #tpu.memory_space<vmem>>, %arg7: memref<1x4xf32, #tpu.memory_space<vmem>>, %arg8: memref<16x4xf32, #tpu.memory_space<vmem>>, %arg9: memref<16x32xf32, #tpu.memory_space<vmem>>) attributes {dimension_semantics = [], scalar_prefetch = 0 : i64, scratch_operands = 1 : i64, tpu.core_type = #tpu.core_type<tc>} {
    %c0 = arith.constant 0 : index
    %c0_0 = arith.constant 0 : index
    %0 = vector.load %arg0[%c0, %c0_0] : memref<16x16xf32, #tpu.memory_space<vmem>>, vector<16x16xf32>
    %c0_1 = arith.constant 0 : index
    %c0_2 = arith.constant 0 : index
    %1 = vector.load %arg3[%c0_1, %c0_2] : memref<1x128xf32, #tpu.memory_space<vmem>>, vector<1x128xf32>
    %c0_3 = arith.constant 0 : index
    %c0_4 = arith.constant 0 : index
    %2 = vector.load %arg4[%c0_3, %c0_4] : memref<1x32xf32, #tpu.memory_space<vmem>>, vector<1x32xf32>
    %c0_5 = arith.constant 0 : index
    %c0_6 = arith.constant 0 : index
    %3 = vector.load %arg5[%c0_5, %c0_6] : memref<1x32xf32, #tpu.memory_space<vmem>>, vector<1x32xf32>
    %c0_7 = arith.constant 0 : index
    %c0_8 = arith.constant 0 : index
    %4 = vector.load %arg1[%c0_7, %c0_8] : memref<16x128xf32, #tpu.memory_space<vmem>>, vector<16x128xf32>
    %cst = arith.constant dense<0.000000e+00> : vector<16x128xf32>
    %5 = tpu.matmul %0, %4, %cst {dimension_numbers = #tpu.dot_dimension_numbers<[1], [0], [0], [1], [0, 0, 1, 1], [], []>} : vector<16x16xf32>, vector<16x128xf32>, vector<16x128xf32> -> vector<16x128xf32>
    %6 = vector.broadcast %1 : vector<1x128xf32> to vector<16x128xf32>
    %7 = arith.addf %5, %6 : vector<16x128xf32>
    %c0_9 = arith.constant 0 : index
    %c0_10 = arith.constant 0 : index
    %8 = vector.load %arg2[%c0_9, %c0_10] : memref<32x128xf32, #tpu.memory_space<vmem>>, vector<32x128xf32>
    %9 = vector.extract_strided_slice %7 {offsets = [0, 0], sizes = [16, 32], strides = [1, 1]} : vector<16x128xf32> to vector<16x32xf32>
    %10 = vector.extract_strided_slice %7 {offsets = [0, 32], sizes = [16, 32], strides = [1, 1]} : vector<16x128xf32> to vector<16x32xf32>
    %11 = vector.extract_strided_slice %7 {offsets = [0, 64], sizes = [16, 32], strides = [1, 1]} : vector<16x128xf32> to vector<16x32xf32>
    %12 = vector.extract_strided_slice %7 {offsets = [0, 96], sizes = [16, 32], strides = [1, 1]} : vector<16x128xf32> to vector<16x32xf32>
    %13 = vector.extract_strided_slice %8 {offsets = [0, 0], sizes = [32, 32], strides = [1, 1]} : vector<32x128xf32> to vector<32x32xf32>
    %14 = vector.extract_strided_slice %8 {offsets = [0, 32], sizes = [32, 32], strides = [1, 1]} : vector<32x128xf32> to vector<32x32xf32>
    %15 = vector.extract_strided_slice %8 {offsets = [0, 64], sizes = [32, 32], strides = [1, 1]} : vector<32x128xf32> to vector<32x32xf32>
    %16 = vector.extract_strided_slice %8 {offsets = [0, 96], sizes = [32, 32], strides = [1, 1]} : vector<32x128xf32> to vector<32x32xf32>
    %cst_11 = arith.constant 0.000000e+00 : f32
    %17 = vector.broadcast %cst_11 : f32 to vector<2x32xf32>
    %cst_12 = arith.constant 0.000000e+00 : f32
    %18 = vector.broadcast %cst_12 : f32 to vector<2x32xf32>
    %19 = vector.extract_strided_slice %9 {offsets = [0, 0], sizes = [2, 32], strides = [1, 1]} : vector<16x32xf32> to vector<2x32xf32>
    %cst_13 = arith.constant dense<0.000000e+00> : vector<2x32xf32>
    %20 = tpu.matmul %17, %13, %cst_13 {dimension_numbers = #tpu.dot_dimension_numbers<[1], [0], [0], [1], [0, 0, 1, 1], [], []>} : vector<2x32xf32>, vector<32x32xf32>, vector<2x32xf32> -> vector<2x32xf32>
    %21 = arith.addf %19, %20 : vector<2x32xf32>
    %22 = vector.extract_strided_slice %10 {offsets = [0, 0], sizes = [2, 32], strides = [1, 1]} : vector<16x32xf32> to vector<2x32xf32>
    %cst_14 = arith.constant dense<0.000000e+00> : vector<2x32xf32>
    %23 = tpu.matmul %17, %14, %cst_14 {dimension_numbers = #tpu.dot_dimension_numbers<[1], [0], [0], [1], [0, 0, 1, 1], [], []>} : vector<2x32xf32>, vector<32x32xf32>, vector<2x32xf32> -> vector<2x32xf32>
    %24 = arith.addf %22, %23 : vector<2x32xf32>
    %25 = vector.extract_strided_slice %11 {offsets = [0, 0], sizes = [2, 32], strides = [1, 1]} : vector<16x32xf32> to vector<2x32xf32>
    %cst_15 = arith.constant dense<0.000000e+00> : vector<2x32xf32>
    %26 = tpu.matmul %17, %15, %cst_15 {dimension_numbers = #tpu.dot_dimension_numbers<[1], [0], [0], [1], [0, 0, 1, 1], [], []>} : vector<2x32xf32>, vector<32x32xf32>, vector<2x32xf32> -> vector<2x32xf32>
    %27 = arith.addf %25, %26 : vector<2x32xf32>
    %28 = vector.extract_strided_slice %12 {offsets = [0, 0], sizes = [2, 32], strides = [1, 1]} : vector<16x32xf32> to vector<2x32xf32>
    %cst_16 = arith.constant dense<0.000000e+00> : vector<2x32xf32>
    %29 = tpu.matmul %17, %16, %cst_16 {dimension_numbers = #tpu.dot_dimension_numbers<[1], [0], [0], [1], [0, 0, 1, 1], [], []>} : vector<2x32xf32>, vector<32x32xf32>, vector<2x32xf32> -> vector<2x32xf32>
    %30 = arith.addf %28, %29 : vector<2x32xf32>
    %31 = arith.negf %21 : vector<2x32xf32>
    %32 = math.exp %31 : vector<2x32xf32>
    %cst_17 = arith.constant 1.000000e+00 : f32
    %33 = vector.broadcast %cst_17 : f32 to vector<2x32xf32>
    %34 = arith.addf %33, %32 : vector<2x32xf32>
    %35 = arith.divf %33, %34 : vector<2x32xf32>
    %36 = arith.negf %24 : vector<2x32xf32>
    %37 = math.exp %36 : vector<2x32xf32>
    %cst_18 = arith.constant 1.000000e+00 : f32
    %38 = vector.broadcast %cst_18 : f32 to vector<2x32xf32>
    %39 = arith.addf %38, %37 : vector<2x32xf32>
    %40 = arith.divf %38, %39 : vector<2x32xf32>
    %41 = math.tanh %27 : vector<2x32xf32>
    %42 = arith.negf %30 : vector<2x32xf32>
    %43 = math.exp %42 : vector<2x32xf32>
    %cst_19 = arith.constant 1.000000e+00 : f32
    %44 = vector.broadcast %cst_19 : f32 to vector<2x32xf32>
    %45 = arith.addf %44, %43 : vector<2x32xf32>
    %46 = arith.divf %44, %45 : vector<2x32xf32>
    %47 = arith.mulf %40, %18 : vector<2x32xf32>
    %48 = arith.mulf %35, %41 : vector<2x32xf32>
    %49 = arith.addf %47, %48 : vector<2x32xf32>
    %50 = math.tanh %49 : vector<2x32xf32>
    %51 = arith.mulf %46, %50 : vector<2x32xf32>
    %c0_20 = arith.constant 0 : index
    %c0_21 = arith.constant 0 : index
    %52 = vector.load %arg9[%c0_20, %c0_21] : memref<16x32xf32, #tpu.memory_space<vmem>>, vector<2x32xf32>
    tpu.vector_store %arg9[%c0_20, %c0_21], %51 {strides = array<i32>} : memref<16x32xf32, #tpu.memory_space<vmem>>, vector<2x32xf32>,
    %53 = vector.extract_strided_slice %9 {offsets = [2, 0], sizes = [2, 32], strides = [1, 1]} : vector<16x32xf32> to vector<2x32xf32>
    %cst_22 = arith.constant dense<0.000000e+00> : vector<2x32xf32>
    %54 = tpu.matmul %51, %13, %cst_22 {dimension_numbers = #tpu.dot_dimension_numbers<[1], [0], [0], [1], [0, 0, 1, 1], [], []>} : vector<2x32xf32>, vector<32x32xf32>, vector<2x32xf32> -> vector<2x32xf32>
    %55 = arith.addf %53, %54 : vector<2x32xf32>
    %56 = vector.extract_strided_slice %10 {offsets = [2, 0], sizes = [2, 32], strides = [1, 1]} : vector<16x32xf32> to vector<2x32xf32>
    %cst_23 = arith.constant dense<0.000000e+00> : vector<2x32xf32>
    %57 = tpu.matmul %51, %14, %cst_23 {dimension_numbers = #tpu.dot_dimension_numbers<[1], [0], [0], [1], [0, 0, 1, 1], [], []>} : vector<2x32xf32>, vector<32x32xf32>, vector<2x32xf32> -> vector<2x32xf32>
    %58 = arith.addf %56, %57 : vector<2x32xf32>
    %59 = vector.extract_strided_slice %11 {offsets = [2, 0], sizes = [2, 32], strides = [1, 1]} : vector<16x32xf32> to vector<2x32xf32>
    %cst_24 = arith.constant dense<0.000000e+00> : vector<2x32xf32>
    %60 = tpu.matmul %51, %15, %cst_24 {dimension_numbers = #tpu.dot_dimension_numbers<[1], [0], [0], [1], [0, 0, 1, 1], [], []>} : vector<2x32xf32>, vector<32x32xf32>, vector<2x32xf32> -> vector<2x32xf32>
    %61 = arith.addf %59, %60 : vector<2x32xf32>
    %62 = vector.extract_strided_slice %12 {offsets = [2, 0], sizes = [2, 32], strides = [1, 1]} : vector<16x32xf32> to vector<2x32xf32>
    %cst_25 = arith.constant dense<0.000000e+00> : vector<2x32xf32>
    %63 = tpu.matmul %51, %16, %cst_25 {dimension_numbers = #tpu.dot_dimension_numbers<[1], [0], [0], [1], [0, 0, 1, 1], [], []>} : vector<2x32xf32>, vector<32x32xf32>, vector<2x32xf32> -> vector<2x32xf32>
    %64 = arith.addf %62, %63 : vector<2x32xf32>
    %65 = arith.negf %55 : vector<2x32xf32>
    %66 = math.exp %65 : vector<2x32xf32>
    %cst_26 = arith.constant 1.000000e+00 : f32
    %67 = vector.broadcast %cst_26 : f32 to vector<2x32xf32>
    %68 = arith.addf %67, %66 : vector<2x32xf32>
    %69 = arith.divf %67, %68 : vector<2x32xf32>
    %70 = arith.negf %58 : vector<2x32xf32>
    %71 = math.exp %70 : vector<2x32xf32>
    %cst_27 = arith.constant 1.000000e+00 : f32
    %72 = vector.broadcast %cst_27 : f32 to vector<2x32xf32>
    %73 = arith.addf %72, %71 : vector<2x32xf32>
    %74 = arith.divf %72, %73 : vector<2x32xf32>
    %75 = math.tanh %61 : vector<2x32xf32>
    %76 = arith.negf %64 : vector<2x32xf32>
    %77 = math.exp %76 : vector<2x32xf32>
    %cst_28 = arith.constant 1.000000e+00 : f32
    %78 = vector.broadcast %cst_28 : f32 to vector<2x32xf32>
    %79 = arith.addf %78, %77 : vector<2x32xf32>
    %80 = arith.divf %78, %79 : vector<2x32xf32>
    %81 = arith.mulf %74, %49 : vector<2x32xf32>
    %82 = arith.mulf %69, %75 : vector<2x32xf32>
    %83 = arith.addf %81, %82 : vector<2x32xf32>
    %84 = math.tanh %83 : vector<2x32xf32>
    %85 = arith.mulf %80, %84 : vector<2x32xf32>
    %c2 = arith.constant 2 : index
    %c0_29 = arith.constant 0 : index
    %86 = vector.load %arg9[%c2, %c0_29] : memref<16x32xf32, #tpu.memory_space<vmem>>, vector<2x32xf32>
    tpu.vector_store %arg9[%c2, %c0_29], %85 {strides = array<i32>} : memref<16x32xf32, #tpu.memory_space<vmem>>, vector<2x32xf32>,
    %87 = vector.extract_strided_slice %9 {offsets = [4, 0], sizes = [2, 32], strides = [1, 1]} : vector<16x32xf32> to vector<2x32xf32>
    %cst_30 = arith.constant dense<0.000000e+00> : vector<2x32xf32>
    %88 = tpu.matmul %85, %13, %cst_30 {dimension_numbers = #tpu.dot_dimension_numbers<[1], [0], [0], [1], [0, 0, 1, 1], [], []>} : vector<2x32xf32>, vector<32x32xf32>, vector<2x32xf32> -> vector<2x32xf32>
    %89 = arith.addf %87, %88 : vector<2x32xf32>
    %90 = vector.extract_strided_slice %10 {offsets = [4, 0], sizes = [2, 32], strides = [1, 1]} : vector<16x32xf32> to vector<2x32xf32>
    %cst_31 = arith.constant dense<0.000000e+00> : vector<2x32xf32>
    %91 = tpu.matmul %85, %14, %cst_31 {dimension_numbers = #tpu.dot_dimension_numbers<[1], [0], [0], [1], [0, 0, 1, 1], [], []>} : vector<2x32xf32>, vector<32x32xf32>, vector<2x32xf32> -> vector<2x32xf32>
    %92 = arith.addf %90, %91 : vector<2x32xf32>
    %93 = vector.extract_strided_slice %11 {offsets = [4, 0], sizes = [2, 32], strides = [1, 1]} : vector<16x32xf32> to vector<2x32xf32>
    %cst_32 = arith.constant dense<0.000000e+00> : vector<2x32xf32>
    %94 = tpu.matmul %85, %15, %cst_32 {dimension_numbers = #tpu.dot_dimension_numbers<[1], [0], [0], [1], [0, 0, 1, 1], [], []>} : vector<2x32xf32>, vector<32x32xf32>, vector<2x32xf32> -> vector<2x32xf32>
    %95 = arith.addf %93, %94 : vector<2x32xf32>
    %96 = vector.extract_strided_slice %12 {offsets = [4, 0], sizes = [2, 32], strides = [1, 1]} : vector<16x32xf32> to vector<2x32xf32>
    %cst_33 = arith.constant dense<0.000000e+00> : vector<2x32xf32>
    %97 = tpu.matmul %85, %16, %cst_33 {dimension_numbers = #tpu.dot_dimension_numbers<[1], [0], [0], [1], [0, 0, 1, 1], [], []>} : vector<2x32xf32>, vector<32x32xf32>, vector<2x32xf32> -> vector<2x32xf32>
    %98 = arith.addf %96, %97 : vector<2x32xf32>
    %99 = arith.negf %89 : vector<2x32xf32>
    %100 = math.exp %99 : vector<2x32xf32>
    %cst_34 = arith.constant 1.000000e+00 : f32
    %101 = vector.broadcast %cst_34 : f32 to vector<2x32xf32>
    %102 = arith.addf %101, %100 : vector<2x32xf32>
    %103 = arith.divf %101, %102 : vector<2x32xf32>
    %104 = arith.negf %92 : vector<2x32xf32>
    %105 = math.exp %104 : vector<2x32xf32>
    %cst_35 = arith.constant 1.000000e+00 : f32
    %106 = vector.broadcast %cst_35 : f32 to vector<2x32xf32>
    %107 = arith.addf %106, %105 : vector<2x32xf32>
    %108 = arith.divf %106, %107 : vector<2x32xf32>
    %109 = math.tanh %95 : vector<2x32xf32>
    %110 = arith.negf %98 : vector<2x32xf32>
    %111 = math.exp %110 : vector<2x32xf32>
    %cst_36 = arith.constant 1.000000e+00 : f32
    %112 = vector.broadcast %cst_36 : f32 to vector<2x32xf32>
    %113 = arith.addf %112, %111 : vector<2x32xf32>
    %114 = arith.divf %112, %113 : vector<2x32xf32>
    %115 = arith.mulf %108, %83 : vector<2x32xf32>
    %116 = arith.mulf %103, %109 : vector<2x32xf32>
    %117 = arith.addf %115, %116 : vector<2x32xf32>
    %118 = math.tanh %117 : vector<2x32xf32>
    %119 = arith.mulf %114, %118 : vector<2x32xf32>
    %c4 = arith.constant 4 : index
    %c0_37 = arith.constant 0 : index
    %120 = vector.load %arg9[%c4, %c0_37] : memref<16x32xf32, #tpu.memory_space<vmem>>, vector<2x32xf32>
    tpu.vector_store %arg9[%c4, %c0_37], %119 {strides = array<i32>} : memref<16x32xf32, #tpu.memory_space<vmem>>, vector<2x32xf32>,
    %121 = vector.extract_strided_slice %9 {offsets = [6, 0], sizes = [2, 32], strides = [1, 1]} : vector<16x32xf32> to vector<2x32xf32>
    %cst_38 = arith.constant dense<0.000000e+00> : vector<2x32xf32>
    %122 = tpu.matmul %119, %13, %cst_38 {dimension_numbers = #tpu.dot_dimension_numbers<[1], [0], [0], [1], [0, 0, 1, 1], [], []>} : vector<2x32xf32>, vector<32x32xf32>, vector<2x32xf32> -> vector<2x32xf32>
    %123 = arith.addf %121, %122 : vector<2x32xf32>
    %124 = vector.extract_strided_slice %10 {offsets = [6, 0], sizes = [2, 32], strides = [1, 1]} : vector<16x32xf32> to vector<2x32xf32>
    %cst_39 = arith.constant dense<0.000000e+00> : vector<2x32xf32>
    %125 = tpu.matmul %119, %14, %cst_39 {dimension_numbers = #tpu.dot_dimension_numbers<[1], [0], [0], [1], [0, 0, 1, 1], [], []>} : vector<2x32xf32>, vector<32x32xf32>, vector<2x32xf32> -> vector<2x32xf32>
    %126 = arith.addf %124, %125 : vector<2x32xf32>
    %127 = vector.extract_strided_slice %11 {offsets = [6, 0], sizes = [2, 32], strides = [1, 1]} : vector<16x32xf32> to vector<2x32xf32>
    %cst_40 = arith.constant dense<0.000000e+00> : vector<2x32xf32>
    %128 = tpu.matmul %119, %15, %cst_40 {dimension_numbers = #tpu.dot_dimension_numbers<[1], [0], [0], [1], [0, 0, 1, 1], [], []>} : vector<2x32xf32>, vector<32x32xf32>, vector<2x32xf32> -> vector<2x32xf32>
    %129 = arith.addf %127, %128 : vector<2x32xf32>
    %130 = vector.extract_strided_slice %12 {offsets = [6, 0], sizes = [2, 32], strides = [1, 1]} : vector<16x32xf32> to vector<2x32xf32>
    %cst_41 = arith.constant dense<0.000000e+00> : vector<2x32xf32>
    %131 = tpu.matmul %119, %16, %cst_41 {dimension_numbers = #tpu.dot_dimension_numbers<[1], [0], [0], [1], [0, 0, 1, 1], [], []>} : vector<2x32xf32>, vector<32x32xf32>, vector<2x32xf32> -> vector<2x32xf32>
    %132 = arith.addf %130, %131 : vector<2x32xf32>
    %133 = arith.negf %123 : vector<2x32xf32>
    %134 = math.exp %133 : vector<2x32xf32>
    %cst_42 = arith.constant 1.000000e+00 : f32
    %135 = vector.broadcast %cst_42 : f32 to vector<2x32xf32>
    %136 = arith.addf %135, %134 : vector<2x32xf32>
    %137 = arith.divf %135, %136 : vector<2x32xf32>
    %138 = arith.negf %126 : vector<2x32xf32>
    %139 = math.exp %138 : vector<2x32xf32>
    %cst_43 = arith.constant 1.000000e+00 : f32
    %140 = vector.broadcast %cst_43 : f32 to vector<2x32xf32>
    %141 = arith.addf %140, %139 : vector<2x32xf32>
    %142 = arith.divf %140, %141 : vector<2x32xf32>
    %143 = math.tanh %129 : vector<2x32xf32>
    %144 = arith.negf %132 : vector<2x32xf32>
    %145 = math.exp %144 : vector<2x32xf32>
    %cst_44 = arith.constant 1.000000e+00 : f32
    %146 = vector.broadcast %cst_44 : f32 to vector<2x32xf32>
    %147 = arith.addf %146, %145 : vector<2x32xf32>
    %148 = arith.divf %146, %147 : vector<2x32xf32>
    %149 = arith.mulf %142, %117 : vector<2x32xf32>
    %150 = arith.mulf %137, %143 : vector<2x32xf32>
    %151 = arith.addf %149, %150 : vector<2x32xf32>
    %152 = math.tanh %151 : vector<2x32xf32>
    %153 = arith.mulf %148, %152 : vector<2x32xf32>
    %c6 = arith.constant 6 : index
    %c0_45 = arith.constant 0 : index
    %154 = vector.load %arg9[%c6, %c0_45] : memref<16x32xf32, #tpu.memory_space<vmem>>, vector<2x32xf32>
    tpu.vector_store %arg9[%c6, %c0_45], %153 {strides = array<i32>} : memref<16x32xf32, #tpu.memory_space<vmem>>, vector<2x32xf32>,
    %155 = vector.extract_strided_slice %9 {offsets = [8, 0], sizes = [2, 32], strides = [1, 1]} : vector<16x32xf32> to vector<2x32xf32>
    %cst_46 = arith.constant dense<0.000000e+00> : vector<2x32xf32>
    %156 = tpu.matmul %153, %13, %cst_46 {dimension_numbers = #tpu.dot_dimension_numbers<[1], [0], [0], [1], [0, 0, 1, 1], [], []>} : vector<2x32xf32>, vector<32x32xf32>, vector<2x32xf32> -> vector<2x32xf32>
    %157 = arith.addf %155, %156 : vector<2x32xf32>
    %158 = vector.extract_strided_slice %10 {offsets = [8, 0], sizes = [2, 32], strides = [1, 1]} : vector<16x32xf32> to vector<2x32xf32>
    %cst_47 = arith.constant dense<0.000000e+00> : vector<2x32xf32>
    %159 = tpu.matmul %153, %14, %cst_47 {dimension_numbers = #tpu.dot_dimension_numbers<[1], [0], [0], [1], [0, 0, 1, 1], [], []>} : vector<2x32xf32>, vector<32x32xf32>, vector<2x32xf32> -> vector<2x32xf32>
    %160 = arith.addf %158, %159 : vector<2x32xf32>
    %161 = vector.extract_strided_slice %11 {offsets = [8, 0], sizes = [2, 32], strides = [1, 1]} : vector<16x32xf32> to vector<2x32xf32>
    %cst_48 = arith.constant dense<0.000000e+00> : vector<2x32xf32>
    %162 = tpu.matmul %153, %15, %cst_48 {dimension_numbers = #tpu.dot_dimension_numbers<[1], [0], [0], [1], [0, 0, 1, 1], [], []>} : vector<2x32xf32>, vector<32x32xf32>, vector<2x32xf32> -> vector<2x32xf32>
    %163 = arith.addf %161, %162 : vector<2x32xf32>
    %164 = vector.extract_strided_slice %12 {offsets = [8, 0], sizes = [2, 32], strides = [1, 1]} : vector<16x32xf32> to vector<2x32xf32>
    %cst_49 = arith.constant dense<0.000000e+00> : vector<2x32xf32>
    %165 = tpu.matmul %153, %16, %cst_49 {dimension_numbers = #tpu.dot_dimension_numbers<[1], [0], [0], [1], [0, 0, 1, 1], [], []>} : vector<2x32xf32>, vector<32x32xf32>, vector<2x32xf32> -> vector<2x32xf32>
    %166 = arith.addf %164, %165 : vector<2x32xf32>
    %167 = arith.negf %157 : vector<2x32xf32>
    %168 = math.exp %167 : vector<2x32xf32>
    %cst_50 = arith.constant 1.000000e+00 : f32
    %169 = vector.broadcast %cst_50 : f32 to vector<2x32xf32>
    %170 = arith.addf %169, %168 : vector<2x32xf32>
    %171 = arith.divf %169, %170 : vector<2x32xf32>
    %172 = arith.negf %160 : vector<2x32xf32>
    %173 = math.exp %172 : vector<2x32xf32>
    %cst_51 = arith.constant 1.000000e+00 : f32
    %174 = vector.broadcast %cst_51 : f32 to vector<2x32xf32>
    %175 = arith.addf %174, %173 : vector<2x32xf32>
    %176 = arith.divf %174, %175 : vector<2x32xf32>
    %177 = math.tanh %163 : vector<2x32xf32>
    %178 = arith.negf %166 : vector<2x32xf32>
    %179 = math.exp %178 : vector<2x32xf32>
    %cst_52 = arith.constant 1.000000e+00 : f32
    %180 = vector.broadcast %cst_52 : f32 to vector<2x32xf32>
    %181 = arith.addf %180, %179 : vector<2x32xf32>
    %182 = arith.divf %180, %181 : vector<2x32xf32>
    %183 = arith.mulf %176, %151 : vector<2x32xf32>
    %184 = arith.mulf %171, %177 : vector<2x32xf32>
    %185 = arith.addf %183, %184 : vector<2x32xf32>
    %186 = math.tanh %185 : vector<2x32xf32>
    %187 = arith.mulf %182, %186 : vector<2x32xf32>
    %c8 = arith.constant 8 : index
    %c0_53 = arith.constant 0 : index
    %188 = vector.load %arg9[%c8, %c0_53] : memref<16x32xf32, #tpu.memory_space<vmem>>, vector<2x32xf32>
    tpu.vector_store %arg9[%c8, %c0_53], %187 {strides = array<i32>} : memref<16x32xf32, #tpu.memory_space<vmem>>, vector<2x32xf32>,
    %189 = vector.extract_strided_slice %9 {offsets = [10, 0], sizes = [2, 32], strides = [1, 1]} : vector<16x32xf32> to vector<2x32xf32>
    %cst_54 = arith.constant dense<0.000000e+00> : vector<2x32xf32>
    %190 = tpu.matmul %187, %13, %cst_54 {dimension_numbers = #tpu.dot_dimension_numbers<[1], [0], [0], [1], [0, 0, 1, 1], [], []>} : vector<2x32xf32>, vector<32x32xf32>, vector<2x32xf32> -> vector<2x32xf32>
    %191 = arith.addf %189, %190 : vector<2x32xf32>
    %192 = vector.extract_strided_slice %10 {offsets = [10, 0], sizes = [2, 32], strides = [1, 1]} : vector<16x32xf32> to vector<2x32xf32>
    %cst_55 = arith.constant dense<0.000000e+00> : vector<2x32xf32>
    %193 = tpu.matmul %187, %14, %cst_55 {dimension_numbers = #tpu.dot_dimension_numbers<[1], [0], [0], [1], [0, 0, 1, 1], [], []>} : vector<2x32xf32>, vector<32x32xf32>, vector<2x32xf32> -> vector<2x32xf32>
    %194 = arith.addf %192, %193 : vector<2x32xf32>
    %195 = vector.extract_strided_slice %11 {offsets = [10, 0], sizes = [2, 32], strides = [1, 1]} : vector<16x32xf32> to vector<2x32xf32>
    %cst_56 = arith.constant dense<0.000000e+00> : vector<2x32xf32>
    %196 = tpu.matmul %187, %15, %cst_56 {dimension_numbers = #tpu.dot_dimension_numbers<[1], [0], [0], [1], [0, 0, 1, 1], [], []>} : vector<2x32xf32>, vector<32x32xf32>, vector<2x32xf32> -> vector<2x32xf32>
    %197 = arith.addf %195, %196 : vector<2x32xf32>
    %198 = vector.extract_strided_slice %12 {offsets = [10, 0], sizes = [2, 32], strides = [1, 1]} : vector<16x32xf32> to vector<2x32xf32>
    %cst_57 = arith.constant dense<0.000000e+00> : vector<2x32xf32>
    %199 = tpu.matmul %187, %16, %cst_57 {dimension_numbers = #tpu.dot_dimension_numbers<[1], [0], [0], [1], [0, 0, 1, 1], [], []>} : vector<2x32xf32>, vector<32x32xf32>, vector<2x32xf32> -> vector<2x32xf32>
    %200 = arith.addf %198, %199 : vector<2x32xf32>
    %201 = arith.negf %191 : vector<2x32xf32>
    %202 = math.exp %201 : vector<2x32xf32>
    %cst_58 = arith.constant 1.000000e+00 : f32
    %203 = vector.broadcast %cst_58 : f32 to vector<2x32xf32>
    %204 = arith.addf %203, %202 : vector<2x32xf32>
    %205 = arith.divf %203, %204 : vector<2x32xf32>
    %206 = arith.negf %194 : vector<2x32xf32>
    %207 = math.exp %206 : vector<2x32xf32>
    %cst_59 = arith.constant 1.000000e+00 : f32
    %208 = vector.broadcast %cst_59 : f32 to vector<2x32xf32>
    %209 = arith.addf %208, %207 : vector<2x32xf32>
    %210 = arith.divf %208, %209 : vector<2x32xf32>
    %211 = math.tanh %197 : vector<2x32xf32>
    %212 = arith.negf %200 : vector<2x32xf32>
    %213 = math.exp %212 : vector<2x32xf32>
    %cst_60 = arith.constant 1.000000e+00 : f32
    %214 = vector.broadcast %cst_60 : f32 to vector<2x32xf32>
    %215 = arith.addf %214, %213 : vector<2x32xf32>
    %216 = arith.divf %214, %215 : vector<2x32xf32>
    %217 = arith.mulf %210, %185 : vector<2x32xf32>
    %218 = arith.mulf %205, %211 : vector<2x32xf32>
    %219 = arith.addf %217, %218 : vector<2x32xf32>
    %220 = math.tanh %219 : vector<2x32xf32>
    %221 = arith.mulf %216, %220 : vector<2x32xf32>
    %c10 = arith.constant 10 : index
    %c0_61 = arith.constant 0 : index
    %222 = vector.load %arg9[%c10, %c0_61] : memref<16x32xf32, #tpu.memory_space<vmem>>, vector<2x32xf32>
    tpu.vector_store %arg9[%c10, %c0_61], %221 {strides = array<i32>} : memref<16x32xf32, #tpu.memory_space<vmem>>, vector<2x32xf32>,
    %223 = vector.extract_strided_slice %9 {offsets = [12, 0], sizes = [2, 32], strides = [1, 1]} : vector<16x32xf32> to vector<2x32xf32>
    %cst_62 = arith.constant dense<0.000000e+00> : vector<2x32xf32>
    %224 = tpu.matmul %221, %13, %cst_62 {dimension_numbers = #tpu.dot_dimension_numbers<[1], [0], [0], [1], [0, 0, 1, 1], [], []>} : vector<2x32xf32>, vector<32x32xf32>, vector<2x32xf32> -> vector<2x32xf32>
    %225 = arith.addf %223, %224 : vector<2x32xf32>
    %226 = vector.extract_strided_slice %10 {offsets = [12, 0], sizes = [2, 32], strides = [1, 1]} : vector<16x32xf32> to vector<2x32xf32>
    %cst_63 = arith.constant dense<0.000000e+00> : vector<2x32xf32>
    %227 = tpu.matmul %221, %14, %cst_63 {dimension_numbers = #tpu.dot_dimension_numbers<[1], [0], [0], [1], [0, 0, 1, 1], [], []>} : vector<2x32xf32>, vector<32x32xf32>, vector<2x32xf32> -> vector<2x32xf32>
    %228 = arith.addf %226, %227 : vector<2x32xf32>
    %229 = vector.extract_strided_slice %11 {offsets = [12, 0], sizes = [2, 32], strides = [1, 1]} : vector<16x32xf32> to vector<2x32xf32>
    %cst_64 = arith.constant dense<0.000000e+00> : vector<2x32xf32>
    %230 = tpu.matmul %221, %15, %cst_64 {dimension_numbers = #tpu.dot_dimension_numbers<[1], [0], [0], [1], [0, 0, 1, 1], [], []>} : vector<2x32xf32>, vector<32x32xf32>, vector<2x32xf32> -> vector<2x32xf32>
    %231 = arith.addf %229, %230 : vector<2x32xf32>
    %232 = vector.extract_strided_slice %12 {offsets = [12, 0], sizes = [2, 32], strides = [1, 1]} : vector<16x32xf32> to vector<2x32xf32>
    %cst_65 = arith.constant dense<0.000000e+00> : vector<2x32xf32>
    %233 = tpu.matmul %221, %16, %cst_65 {dimension_numbers = #tpu.dot_dimension_numbers<[1], [0], [0], [1], [0, 0, 1, 1], [], []>} : vector<2x32xf32>, vector<32x32xf32>, vector<2x32xf32> -> vector<2x32xf32>
    %234 = arith.addf %232, %233 : vector<2x32xf32>
    %235 = arith.negf %225 : vector<2x32xf32>
    %236 = math.exp %235 : vector<2x32xf32>
    %cst_66 = arith.constant 1.000000e+00 : f32
    %237 = vector.broadcast %cst_66 : f32 to vector<2x32xf32>
    %238 = arith.addf %237, %236 : vector<2x32xf32>
    %239 = arith.divf %237, %238 : vector<2x32xf32>
    %240 = arith.negf %228 : vector<2x32xf32>
    %241 = math.exp %240 : vector<2x32xf32>
    %cst_67 = arith.constant 1.000000e+00 : f32
    %242 = vector.broadcast %cst_67 : f32 to vector<2x32xf32>
    %243 = arith.addf %242, %241 : vector<2x32xf32>
    %244 = arith.divf %242, %243 : vector<2x32xf32>
    %245 = math.tanh %231 : vector<2x32xf32>
    %246 = arith.negf %234 : vector<2x32xf32>
    %247 = math.exp %246 : vector<2x32xf32>
    %cst_68 = arith.constant 1.000000e+00 : f32
    %248 = vector.broadcast %cst_68 : f32 to vector<2x32xf32>
    %249 = arith.addf %248, %247 : vector<2x32xf32>
    %250 = arith.divf %248, %249 : vector<2x32xf32>
    %251 = arith.mulf %244, %219 : vector<2x32xf32>
    %252 = arith.mulf %239, %245 : vector<2x32xf32>
    %253 = arith.addf %251, %252 : vector<2x32xf32>
    %254 = math.tanh %253 : vector<2x32xf32>
    %255 = arith.mulf %250, %254 : vector<2x32xf32>
    %c12 = arith.constant 12 : index
    %c0_69 = arith.constant 0 : index
    %256 = vector.load %arg9[%c12, %c0_69] : memref<16x32xf32, #tpu.memory_space<vmem>>, vector<2x32xf32>
    tpu.vector_store %arg9[%c12, %c0_69], %255 {strides = array<i32>} : memref<16x32xf32, #tpu.memory_space<vmem>>, vector<2x32xf32>,
    %257 = vector.extract_strided_slice %9 {offsets = [14, 0], sizes = [2, 32], strides = [1, 1]} : vector<16x32xf32> to vector<2x32xf32>
    %cst_70 = arith.constant dense<0.000000e+00> : vector<2x32xf32>
    %258 = tpu.matmul %255, %13, %cst_70 {dimension_numbers = #tpu.dot_dimension_numbers<[1], [0], [0], [1], [0, 0, 1, 1], [], []>} : vector<2x32xf32>, vector<32x32xf32>, vector<2x32xf32> -> vector<2x32xf32>
    %259 = arith.addf %257, %258 : vector<2x32xf32>
    %260 = vector.extract_strided_slice %10 {offsets = [14, 0], sizes = [2, 32], strides = [1, 1]} : vector<16x32xf32> to vector<2x32xf32>
    %cst_71 = arith.constant dense<0.000000e+00> : vector<2x32xf32>
    %261 = tpu.matmul %255, %14, %cst_71 {dimension_numbers = #tpu.dot_dimension_numbers<[1], [0], [0], [1], [0, 0, 1, 1], [], []>} : vector<2x32xf32>, vector<32x32xf32>, vector<2x32xf32> -> vector<2x32xf32>
    %262 = arith.addf %260, %261 : vector<2x32xf32>
    %263 = vector.extract_strided_slice %11 {offsets = [14, 0], sizes = [2, 32], strides = [1, 1]} : vector<16x32xf32> to vector<2x32xf32>
    %cst_72 = arith.constant dense<0.000000e+00> : vector<2x32xf32>
    %264 = tpu.matmul %255, %15, %cst_72 {dimension_numbers = #tpu.dot_dimension_numbers<[1], [0], [0], [1], [0, 0, 1, 1], [], []>} : vector<2x32xf32>, vector<32x32xf32>, vector<2x32xf32> -> vector<2x32xf32>
    %265 = arith.addf %263, %264 : vector<2x32xf32>
    %266 = vector.extract_strided_slice %12 {offsets = [14, 0], sizes = [2, 32], strides = [1, 1]} : vector<16x32xf32> to vector<2x32xf32>
    %cst_73 = arith.constant dense<0.000000e+00> : vector<2x32xf32>
    %267 = tpu.matmul %255, %16, %cst_73 {dimension_numbers = #tpu.dot_dimension_numbers<[1], [0], [0], [1], [0, 0, 1, 1], [], []>} : vector<2x32xf32>, vector<32x32xf32>, vector<2x32xf32> -> vector<2x32xf32>
    %268 = arith.addf %266, %267 : vector<2x32xf32>
    %269 = arith.negf %259 : vector<2x32xf32>
    %270 = math.exp %269 : vector<2x32xf32>
    %cst_74 = arith.constant 1.000000e+00 : f32
    %271 = vector.broadcast %cst_74 : f32 to vector<2x32xf32>
    %272 = arith.addf %271, %270 : vector<2x32xf32>
    %273 = arith.divf %271, %272 : vector<2x32xf32>
    %274 = arith.negf %262 : vector<2x32xf32>
    %275 = math.exp %274 : vector<2x32xf32>
    %cst_75 = arith.constant 1.000000e+00 : f32
    %276 = vector.broadcast %cst_75 : f32 to vector<2x32xf32>
    %277 = arith.addf %276, %275 : vector<2x32xf32>
    %278 = arith.divf %276, %277 : vector<2x32xf32>
    %279 = math.tanh %265 : vector<2x32xf32>
    %280 = arith.negf %268 : vector<2x32xf32>
    %281 = math.exp %280 : vector<2x32xf32>
    %cst_76 = arith.constant 1.000000e+00 : f32
    %282 = vector.broadcast %cst_76 : f32 to vector<2x32xf32>
    %283 = arith.addf %282, %281 : vector<2x32xf32>
    %284 = arith.divf %282, %283 : vector<2x32xf32>
    %285 = arith.mulf %278, %253 : vector<2x32xf32>
    %286 = arith.mulf %273, %279 : vector<2x32xf32>
    %287 = arith.addf %285, %286 : vector<2x32xf32>
    %288 = math.tanh %287 : vector<2x32xf32>
    %289 = arith.mulf %284, %288 : vector<2x32xf32>
    %c14 = arith.constant 14 : index
    %c0_77 = arith.constant 0 : index
    %290 = vector.load %arg9[%c14, %c0_77] : memref<16x32xf32, #tpu.memory_space<vmem>>, vector<2x32xf32>
    tpu.vector_store %arg9[%c14, %c0_77], %289 {strides = array<i32>} : memref<16x32xf32, #tpu.memory_space<vmem>>, vector<2x32xf32>,
    %c0_78 = arith.constant 0 : index
    %c0_79 = arith.constant 0 : index
    %291 = vector.load %arg9[%c0_78, %c0_79] : memref<16x32xf32, #tpu.memory_space<vmem>>, vector<16x32xf32>
    %cst_80 = arith.constant dense<0.000000e+00> : vector<16xf32>
    %292 = vector.multi_reduction <add>, %291, %cst_80 [1] : vector<16x32xf32> to vector<16xf32>
    %293 = vector.shape_cast %292 : vector<16xf32> to vector<16x1xf32>
    %cst_81 = arith.constant 3.200000e+01 : f32
    %294 = vector.broadcast %cst_81 : f32 to vector<16x1xf32>
    %295 = arith.divf %293, %294 : vector<16x1xf32>
    %296 = vector.broadcast %295 : vector<16x1xf32> to vector<16x32xf32>
    %297 = arith.subf %291, %296 : vector<16x32xf32>
    %298 = arith.mulf %297, %297 : vector<16x32xf32>
    %cst_82 = arith.constant dense<0.000000e+00> : vector<16xf32>
    %299 = vector.multi_reduction <add>, %298, %cst_82 [1] : vector<16x32xf32> to vector<16xf32>
    %300 = vector.shape_cast %299 : vector<16xf32> to vector<16x1xf32>
    %cst_83 = arith.constant 3.200000e+01 : f32
    %301 = vector.broadcast %cst_83 : f32 to vector<16x1xf32>
    %302 = arith.divf %300, %301 : vector<16x1xf32>
    %303 = vector.broadcast %295 : vector<16x1xf32> to vector<16x32xf32>
    %304 = arith.subf %291, %303 : vector<16x32xf32>
    %cst_84 = arith.constant 9.99999974E-6 : f32
    %305 = vector.broadcast %cst_84 : f32 to vector<16x1xf32>
    %306 = arith.addf %302, %305 : vector<16x1xf32>
    %307 = math.rsqrt %306 : vector<16x1xf32>
    %308 = vector.broadcast %307 : vector<16x1xf32> to vector<16x32xf32>
    %309 = arith.mulf %304, %308 : vector<16x32xf32>
    %310 = vector.broadcast %2 : vector<1x32xf32> to vector<16x32xf32>
    %311 = arith.mulf %309, %310 : vector<16x32xf32>
    %312 = vector.broadcast %3 : vector<1x32xf32> to vector<16x32xf32>
    %313 = arith.addf %311, %312 : vector<16x32xf32>
    %c0_85 = arith.constant 0 : index
    %c0_86 = arith.constant 0 : index
    %314 = vector.load %arg6[%c0_85, %c0_86] : memref<32x4xf32, #tpu.memory_space<vmem>>, vector<32x4xf32>
    %cst_87 = arith.constant dense<0.000000e+00> : vector<16x4xf32>
    %315 = tpu.matmul %313, %314, %cst_87 {dimension_numbers = #tpu.dot_dimension_numbers<[1], [0], [0], [1], [0, 0, 1, 1], [], []>} : vector<16x32xf32>, vector<32x4xf32>, vector<16x4xf32> -> vector<16x4xf32>
    %c0_88 = arith.constant 0 : index
    %c0_89 = arith.constant 0 : index
    %316 = vector.load %arg7[%c0_88, %c0_89] : memref<1x4xf32, #tpu.memory_space<vmem>>, vector<1x4xf32>
    %317 = vector.broadcast %316 : vector<1x4xf32> to vector<16x4xf32>
    %318 = arith.addf %315, %317 : vector<16x4xf32>
    %319 = arith.negf %318 : vector<16x4xf32>
    %320 = math.exp %319 : vector<16x4xf32>
    %cst_90 = arith.constant 1.000000e+00 : f32
    %321 = vector.broadcast %cst_90 : f32 to vector<16x4xf32>
    %322 = arith.addf %321, %320 : vector<16x4xf32>
    %323 = arith.divf %321, %322 : vector<16x4xf32>
    %c0_91 = arith.constant 0 : index
    %c0_92 = arith.constant 0 : index
    %324 = vector.load %arg8[%c0_91, %c0_92] : memref<16x4xf32, #tpu.memory_space<vmem>>, vector<16x4xf32>
    tpu.vector_store %arg8[%c0_91, %c0_92], %323 {strides = array<i32>} : memref<16x4xf32, #tpu.memory_space<vmem>>, vector<16x4xf32>,
    return
  }
}

</mosaic_0001>

<llo_original>
// kernel: tpu_custom_call.1
$region0: #{tpu_custom_call.1}
  #allocation0 [shape = 'u32[]', space=smem, size = 0x4, offset = 0x4, fixed_abs, tag = 'smem constant byte address 0x4 - core index']
  #allocation1 [shape = 'u32[72,128]{1,0:T(1,128)}', space=vmem, size = 0x9000, scoped, tag = 'internal scratch']
  #allocation2 [shape = 'f32[16,32]{1,0:T(8,128)}', space=vmem, size = 0x2000, scoped, tag = 'scratch operand']
  %s0 = inlined_call_operand.hbm [shape: f32[16,16], index: 0, kind: input, shape index: {}]
  %s1 = inlined_call_operand.hbm [shape: f32[16,128], index: 1, kind: input, shape index: {}]
  %s2 = inlined_call_operand.vmem [shape: f32[32,128], index: 2, kind: input, shape index: {}]
  %s3 = inlined_call_operand.vmem [shape: f32[1,128], index: 3, kind: input, shape index: {}]
  %s4 = inlined_call_operand.vmem [shape: f32[1,32], index: 4, kind: input, shape index: {}]
  %s5 = inlined_call_operand.vmem [shape: f32[1,32], index: 5, kind: input, shape index: {}]
  %s6 = inlined_call_operand.vmem [shape: f32[32,4], index: 6, kind: input, shape index: {}]
  %s7 = inlined_call_operand.vmem [shape: f32[1,4], index: 7, kind: input, shape index: {}]
  %s8 = inlined_call_operand.vmem [shape: f32[16,4], index: 8, kind: output, shape index: {}]
  %s9 = sld [smem:[#allocation0]]
  $region50: #{tpu_custom_call.1} parent=0
    _
  %s11 = ssub.s32 1, %s9
  %s12 = scalar_select 0, %s11, %s9
  $region1: #{tpu_custom_call.1} parent=0
    #allocation3 [shape = 'u8[8192]{0}', space=vmem, size = 0x2000, scoped, tag = 'input window, operand 0, single buffered']
    #allocation4 [shape = 's32[1]{0}', space=sflag, size = 0x4, scoped, tag = 'scoped memory for tpu_custom_call.1']
    #allocation5 [shape = 'u8[8192]{0}', space=vmem, size = 0x2000, scoped, tag = 'input window, operand 1, single buffered']
    #allocation6 [shape = 's32[1]{0}', space=sflag, size = 0x4, scoped, tag = 'scoped memory for tpu_custom_call.1']
    %13 = vsyncpa [#allocation4], 0
    %14 = vsyncpa [#allocation6], 0
    // Predicated region
    $region2: #{tpu_custom_call.1} parent=1 // pred_check
      _
    $region3: #{tpu_custom_call.1} parent=1 // pred_check_branch
      %16 = sbr.rel (0) target = $region5
    $region4: #{tpu_custom_call.1} parent=1 // pred_region
      %18 = vsyncadd [#allocation4], 0
      %s19 = sshll.u32 %s0, 4
      %s20 = int_to_ptr.hbm [resolvable:$true] %s19
      %s21 = sshll.u32 [#allocation3], 4
      %s22 = int_to_ptr.vmem [resolvable:$true] %s21
      %27 = dma.hbm_to_vmem [thread:$0]  %s20, 256, %s22, [#allocation4], 128, 128, 8
    $region5: #{tpu_custom_call.1} parent=1 // pred_fallthru
      _
    // Predicated region
    $region6: #{tpu_custom_call.1} parent=1 // pred_check
      _
    $region7: #{tpu_custom_call.1} parent=1 // pred_check_branch
      %29 = sbr.rel (0) target = $region9
    $region8: #{tpu_custom_call.1} parent=1 // pred_region
      %31 = vsyncadd [#allocation6], 0
      %s32 = sshll.u32 %s1, 4
      %s33 = int_to_ptr.hbm [resolvable:$true] %s32
      %s34 = sshll.u32 [#allocation5], 4
      %s35 = int_to_ptr.vmem [resolvable:$true] %s34
      %40 = dma.hbm_to_vmem [thread:$0]  %s33, 256, %s35, [#allocation6], 128, 128, 8
    $region9: #{tpu_custom_call.1} parent=1 // pred_fallthru
      _
    // Predicated region
    $region10: #{tpu_custom_call.1} parent=1 // pred_check
      _
    $region11: #{tpu_custom_call.1} parent=1 // pred_check_branch
      %42 = sbr.rel (0) target = $region13
    $region12: #{tpu_custom_call.1} parent=1 // pred_region
      _
    $region13: #{tpu_custom_call.1} parent=1 // pred_fallthru
      _
    // Predicated region
    $region14: #{tpu_custom_call.1} parent=1 // pred_check
      _
    $region15: #{tpu_custom_call.1} parent=1 // pred_check_branch
      %44 = sbr.rel (0) target = $region17
    $region16: #{tpu_custom_call.1} parent=1 // pred_region
      _
    $region17: #{tpu_custom_call.1} parent=1 // pred_fallthru
      _
    // Predicated region
    $region18: #{tpu_custom_call.1} parent=1 // pred_check
      _
    $region19: #{tpu_custom_call.1} parent=1 // pred_check_branch
      %46 = sbr.rel (0) target = $region21
    $region20: #{tpu_custom_call.1} parent=1 // pred_region
      _
    $region21: #{tpu_custom_call.1} parent=1 // pred_fallthru
      _
    // Predicated region
    $region22: #{tpu_custom_call.1} parent=1 // pred_check
      _
    $region23: #{tpu_custom_call.1} parent=1 // pred_check_branch
      %48 = sbr.rel (0) target = $region25
    $region24: #{tpu_custom_call.1} parent=1 // pred_region
      _
    $region25: #{tpu_custom_call.1} parent=1 // pred_fallthru
      _
    // Predicated region
    $region26: #{tpu_custom_call.1} parent=1 // pred_check
      _
    $region27: #{tpu_custom_call.1} parent=1 // pred_check_branch
      %50 = sbr.rel (0) target = $region29
    $region28: #{tpu_custom_call.1} parent=1 // pred_region
      _
    $region29: #{tpu_custom_call.1} parent=1 // pred_fallthru
      _
    // Predicated region
    $region30: #{tpu_custom_call.1} parent=1 // pred_check
      _
    $region31: #{tpu_custom_call.1} parent=1 // pred_check_branch
      %52 = sbr.rel (0) target = $region33
    $region32: #{tpu_custom_call.1} parent=1 // pred_region
      _
    $region33: #{tpu_custom_call.1} parent=1 // pred_fallthru
      _
    // Predicated region
    $region34: #{tpu_custom_call.1} parent=1 // pred_check
      _
    $region35: #{tpu_custom_call.1} parent=1 // pred_check_branch
      %54 = sbr.rel (0) target = $region37
    $region36: #{tpu_custom_call.1} parent=1 // pred_region
      %56 = dma.done [#allocation4], 256
    $region37: #{tpu_custom_call.1} parent=1 // pred_fallthru
      _
    // Predicated region
    $region38: #{tpu_custom_call.1} parent=1 // pred_check
      _
    $region39: #{tpu_custom_call.1} parent=1 // pred_check_branch
      %58 = sbr.rel (0) target = $region41
    $region40: #{tpu_custom_call.1} parent=1 // pred_region
      %60 = dma.done [#allocation6], 256
    $region41: #{tpu_custom_call.1} parent=1 // pred_fallthru
      _
    %v61 = vld [vmem:[#allocation3] sm:$0xff]
    %v62 = vld [vmem:[#allocation3 + $0x8] sm:$0xff]
    %v63 = vld [vmem:[%s3] sm:$0x1]
    %v64 = vld [vmem:[%s4] sm:$0x1]
    %v65 = vld [vmem:[%s5] sm:$0x1]
    %v66 = vld [vmem:[#allocation5] sm:$0xff]
    %v67 = vld [vmem:[#allocation5 + $0x8] sm:$0xff]
    %v69 = vperm.slane %v63, 0
    %vm71 = vcmask 130048
    %v73 = vsel %vm71, %v61, 0
    %v76 = vsel %vm71, %v62, 0
    %78 = vmatpush.msra.mxu0 0.0
    %79 = vmatpush.msra.mxu0 0.0
    %80 = vmatpush.msra.mxu0 0.0
    %81 = vmatpush.msra.mxu0 0.0
    %82 = vmatpush.msra.mxu0 0.0
    %83 = vmatpush.msra.mxu0 0.0
    %84 = vmatpush.msra.mxu0 0.0
    %85 = vmatpush.msra.mxu0 0.0
    %86 = vmatpush.msra.mxu0 0.0
    %87 = vmatpush.msra.mxu0 0.0
    %88 = vmatpush.msra.mxu0 0.0
    %89 = vmatpush.msra.mxu0 0.0
    %90 = vmatpush.msra.mxu0 0.0
    %91 = vmatpush.msra.mxu0 0.0
    %92 = vmatpush.msra.mxu0 %v67
    %93 = vmatpush.msra.mxu0 %v66
    %94 = vmatmul.f32.gmra.mxu0 %v73
    %v95 = vpop.f32.mrf.mxu0
    %v96 = vadd.f32 %v69, %v95
    %97 = vmatmul.f32.gmra.mxu0 %v76
    %v98 = vpop.f32.mrf.mxu0
    %v99 = vadd.f32 %v69, %v98
    %100 = vdwg.mxu0
    %v101 = vld [vmem:[%s2] sm:$0xff]
    %v102 = vld [vmem:[%s2 + $0x8] sm:$0xff]
    %v103 = vld [vmem:[%s2 + $0x10] sm:$0xff]
    %v104 = vld [vmem:[%s2 + $0x18] sm:$0xff]
    %vm105 = vcmask 261120
    %v107 = vsel %vm105, 0.0, 0
    %109 = vmatpush.msra.mxu0 0.0
    %110 = vmatpush.msra.mxu0 0.0
    %111 = vmatpush.msra.mxu0 0.0
    %112 = vmatpush.msra.mxu0 0.0
    %113 = vmatpush.msra.mxu0 0.0
    %114 = vmatpush.msra.mxu0 0.0
    %115 = vmatpush.msra.mxu0 0.0
    %116 = vmatpush.msra.mxu0 0.0
    %117 = vmatpush.msra.mxu0 0.0
    %118 = vmatpush.msra.mxu0 0.0
    %119 = vmatpush.msra.mxu0 0.0
    %120 = vmatpush.msra.mxu0 0.0
    %121 = vmatpush.msra.mxu0 %v104
    %122 = vmatpush.msra.mxu0 %v103
    %123 = vmatpush.msra.mxu0 %v102
    %124 = vmatpush.msra.mxu0 %v101
    %125 = vmatmul.f32.gmra.mxu0 %v107
    %v126 = vpop.f32.mrf.mxu0
    %v127 = vadd.f32 0.0, %v126
    %128 = vdwg.mxu0
    %v129 = vadd.f32 %v96, %v127
    %134 = vrot.lane.b32.xlu0 %v101, 96
    %v135 = vpop.permute.xlu0 %134
    %136 = vrot.lane.b32.xlu0 %v102, 96
    %v137 = vpop.permute.xlu0 %136
    %138 = vrot.lane.b32.xlu0 %v103, 96
    %v139 = vpop.permute.xlu0 %138
    %140 = vrot.lane.b32.xlu0 %v104, 96
    %v141 = vpop.permute.xlu0 %140
    %146 = vmatpush.msra.mxu0 0.0
    %147 = vmatpush.msra.mxu0 0.0
    %148 = vmatpush.msra.mxu0 0.0
    %149 = vmatpush.msra.mxu0 0.0
    %150 = vmatpush.msra.mxu0 0.0
    %151 = vmatpush.msra.mxu0 0.0
    %152 = vmatpush.msra.mxu0 0.0
    %153 = vmatpush.msra.mxu0 0.0
    %154 = vmatpush.msra.mxu0 0.0
    %155 = vmatpush.msra.mxu0 0.0
    %156 = vmatpush.msra.mxu0 0.0
    %157 = vmatpush.msra.mxu0 0.0
    %158 = vmatpush.msra.mxu0 %v141
    %159 = vmatpush.msra.mxu0 %v139
    %160 = vmatpush.msra.mxu0 %v137
    %161 = vmatpush.msra.mxu0 %v135
    %162 = vmatmul.f32.gmra.mxu0 %v107
    %v163 = vpop.f32.mrf.mxu0
    %v164 = vadd.f32 0.0, %v163
    %165 = vdwg.mxu0
    %167 = vrot.lane.b32.xlu0 %v164, 32
    %v168 = vpop.permute.xlu0 %167
    %v170 = vadd.f32 %v96, %v168
    %171 = vrot.lane.b32.xlu0 %v101, 64
    %v172 = vpop.permute.xlu0 %171
    %173 = vrot.lane.b32.xlu0 %v102, 64
    %v174 = vpop.permute.xlu0 %173
    %175 = vrot.lane.b32.xlu0 %v103, 64
    %v176 = vpop.permute.xlu0 %175
    %177 = vrot.lane.b32.xlu0 %v104, 64
    %v178 = vpop.permute.xlu0 %177
    %183 = vmatpush.msra.mxu0 0.0
    %184 = vmatpush.msra.mxu0 0.0
    %185 = vmatpush.msra.mxu0 0.0
    %186 = vmatpush.msra.mxu0 0.0
    %187 = vmatpush.msra.mxu0 0.0
    %188 = vmatpush.msra.mxu0 0.0
    %189 = vmatpush.msra.mxu0 0.0
    %190 = vmatpush.msra.mxu0 0.0
    %191 = vmatpush.msra.mxu0 0.0
    %192 = vmatpush.msra.mxu0 0.0
    %193 = vmatpush.msra.mxu0 0.0
    %194 = vmatpush.msra.mxu0 0.0
    %195 = vmatpush.msra.mxu0 %v178
    %196 = vmatpush.msra.mxu0 %v176
    %197 = vmatpush.msra.mxu0 %v174
    %198 = vmatpush.msra.mxu0 %v172
    %199 = vmatmul.f32.gmra.mxu0 %v107
    %v200 = vpop.f32.mrf.mxu0
    %v201 = vadd.f32 0.0, %v200
    %202 = vdwg.mxu0
    %204 = vrot.lane.b32.xlu0 %v201, 64
    %v205 = vpop.permute.xlu0 %204
    %v207 = vadd.f32 %v96, %v205
    %208 = vrot.lane.b32.xlu0 %v101, 32
    %v209 = vpop.permute.xlu0 %208
    %210 = vrot.lane.b32.xlu0 %v102, 32
    %v211 = vpop.permute.xlu0 %210
    %212 = vrot.lane.b32.xlu0 %v103, 32
    %v213 = vpop.permute.xlu0 %212
    %214 = vrot.lane.b32.xlu0 %v104, 32
    %v215 = vpop.permute.xlu0 %214
    %220 = vmatpush.msra.mxu0 0.0
    %221 = vmatpush.msra.mxu0 0.0
    %222 = vmatpush.msra.mxu0 0.0
    %223 = vmatpush.msra.mxu0 0.0
    %224 = vmatpush.msra.mxu0 0.0
    %225 = vmatpush.msra.mxu0 0.0
    %226 = vmatpush.msra.mxu0 0.0
    %227 = vmatpush.msra.mxu0 0.0
    %228 = vmatpush.msra.mxu0 0.0
    %229 = vmatpush.msra.mxu0 0.0
    %230 = vmatpush.msra.mxu0 0.0
    %231 = vmatpush.msra.mxu0 0.0
    %232 = vmatpush.msra.mxu0 %v215
    %233 = vmatpush.msra.mxu0 %v213
    %234 = vmatpush.msra.mxu0 %v211
    %235 = vmatpush.msra.mxu0 %v209
    %236 = vmatmul.f32.gmra.mxu0 %v107
    %v237 = vpop.f32.mrf.mxu0
    %v238 = vadd.f32 0.0, %v237
    %239 = vdwg.mxu0
    %241 = vrot.lane.b32.xlu0 %v238, 96
    %v242 = vpop.permute.xlu0 %241
    %v244 = vadd.f32 %v96, %v242
    %v245 = vxor.u32 %v129, 2147483648
    %v246 = vmul.f32 %v245, 1.442695
    %v247 = vpow.pop %v246
    %v248 = vadd.f32 %v247, 1.0
    %v249 = vrcp.pop %v248
    %v250 = vmul.f32 %v248, %v249
    %v251 = vsub.f32 1.0, %v250
    %v252 = vmul.f32 %v249, %v251
    %v253 = vadd.f32 %v249, %v252
    %vm254 = vweird.f32 %v248
    %vm255 = vweird.f32 %v249
    %vm256 = vmor %vm254, %vm255
    %v257 = vsel %vm256, %v249, %v253
    %v258 = vand.u32 2147483647, %v248
    %vm259 = vcmp.eq.f32.partialorder %v258, 8.507059e+37
    %v260 = vand.u32 %v248, 2147483648
    %v261 = vor.u32 1.1754944e-38, %v260
    %v262 = vsel %vm259, %v261, %v257
    %v263 = vmul.f32 1.0, %v262
    %v264 = vxor.u32 %v170, 2147483648
    %v265 = vmul.f32 %v264, 1.442695
    %v266 = vpow.pop %v265
    %v267 = vadd.f32 %v266, 1.0
    %v268 = vrcp.pop %v267
    %v269 = vmul.f32 %v267, %v268
    %v270 = vsub.f32 1.0, %v269
    %v271 = vmul.f32 %v268, %v270
    %v272 = vadd.f32 %v268, %v271
    %vm273 = vweird.f32 %v267
    %vm274 = vweird.f32 %v268
    %vm275 = vmor %vm273, %vm274
    %v276 = vsel %vm275, %v268, %v272
    %v277 = vand.u32 2147483647, %v267
    %vm278 = vcmp.eq.f32.partialorder %v277, 8.507059e+37
    %v279 = vand.u32 %v267, 2147483648
    %v280 = vor.u32 1.1754944e-38, %v279
    %v281 = vsel %vm278, %v280, %v276
    %v282 = vmul.f32 1.0, %v281
    %v283 = vtanh.pop %v207
    %v284 = vxor.u32 %v244, 2147483648
    %v285 = vmul.f32 %v284, 1.442695
    %v286 = vpow.pop %v285
    %v287 = vadd.f32 %v286, 1.0
    %v288 = vrcp.pop %v287
    %v289 = vmul.f32 %v287, %v288
    %v290 = vsub.f32 1.0, %v289
    %v291 = vmul.f32 %v288, %v290
    %v292 = vadd.f32 %v288, %v291
    %vm293 = vweird.f32 %v287
    %vm294 = vweird.f32 %v288
    %vm295 = vmor %vm293, %vm294
    %v296 = vsel %vm295, %v288, %v292
    %v297 = vand.u32 2147483647, %v287
    %vm298 = vcmp.eq.f32.partialorder %v297, 8.507059e+37
    %v299 = vand.u32 %v287, 2147483648
    %v300 = vor.u32 1.1754944e-38, %v299
    %v301 = vsel %vm298, %v300, %v296
    %v302 = vmul.f32 1.0, %v301
    %v303 = vmul.f32 %v282, 0.0
    %305 = vrot.lane.b32.xlu0 %v283, 64
    %v306 = vpop.permute.xlu0 %305
    %v308 = vmul.f32 %v263, %v306
    %310 = vrot.lane.b32.xlu0 %v308, 32
    %v311 = vpop.permute.xlu0 %310
    %v313 = vadd.f32 %v303, %v311
    %v314 = vtanh.pop %v313
    %316 = vrot.lane.b32.xlu0 %v314, 64
    %v317 = vpop.permute.xlu0 %316
    %v319 = vmul.f32 %v302, %v317
    %321 = vrot.lane.b32.xlu0 %v319, 32
    %v322 = vpop.permute.xlu0 %321
    %vm324 = vcmask 254976
    %325 = vst.msk [vmem:[#allocation2] sm:$0x3] %vm324, %v322
    %v326 = vsel %vm105, %v322, 0
    %328 = vmatpush.msra.mxu0 0.0
    %329 = vmatpush.msra.mxu0 0.0
    %330 = vmatpush.msra.mxu0 0.0
    %331 = vmatpush.msra.mxu0 0.0
    %332 = vmatpush.msra.mxu0 0.0
    %333 = vmatpush.msra.mxu0 0.0
    %334 = vmatpush.msra.mxu0 0.0
    %335 = vmatpush.msra.mxu0 0.0
    %336 = vmatpush.msra.mxu0 0.0
    %337 = vmatpush.msra.mxu0 0.0
    %338 = vmatpush.msra.mxu0 0.0
    %339 = vmatpush.msra.mxu0 0.0
    %340 = vmatpush.msra.mxu0 %v104
    %341 = vmatpush.msra.mxu0 %v103
    %342 = vmatpush.msra.mxu0 %v102
    %343 = vmatpush.msra.mxu0 %v101
    %344 = vmatmul.f32.gmra.mxu0 %v326
    %v345 = vpop.f32.mrf.mxu0
    %v346 = vadd.f32 0.0, %v345
    %347 = vdwg.mxu0
    %v349 = vrot.slane %v346, 6
    %v351 = vadd.f32 %v96, %v349
    %352 = vmatpush.msra.mxu0 0.0
    %353 = vmatpush.msra.mxu0 0.0
    %354 = vmatpush.msra.mxu0 0.0
    %355 = vmatpush.msra.mxu0 0.0
    %356 = vmatpush.msra.mxu0 0.0
    %357 = vmatpush.msra.mxu0 0.0
    %358 = vmatpush.msra.mxu0 0.0
    %359 = vmatpush.msra.mxu0 0.0
    %360 = vmatpush.msra.mxu0 0.0
    %361 = vmatpush.msra.mxu0 0.0
    %362 = vmatpush.msra.mxu0 0.0
    %363 = vmatpush.msra.mxu0 0.0
    %364 = vmatpush.msra.mxu0 %v141
    %365 = vmatpush.msra.mxu0 %v139
    %366 = vmatpush.msra.mxu0 %v137
    %367 = vmatpush.msra.mxu0 %v135
    %368 = vmatmul.f32.gmra.mxu0 %v326
    %v369 = vpop.f32.mrf.mxu0
    %v370 = vadd.f32 0.0, %v369
    %371 = vdwg.mxu0
    %v373 = vrot.slane %v370, 6
    %374 = vrot.lane.b32.xlu0 %v373, 32
    %v375 = vpop.permute.xlu0 %374
    %v377 = vadd.f32 %v96, %v375
    %378 = vmatpush.msra.mxu0 0.0
    %379 = vmatpush.msra.mxu0 0.0
    %380 = vmatpush.msra.mxu0 0.0
    %381 = vmatpush.msra.mxu0 0.0
    %382 = vmatpush.msra.mxu0 0.0
    %383 = vmatpush.msra.mxu0 0.0
    %384 = vmatpush.msra.mxu0 0.0
    %385 = vmatpush.msra.mxu0 0.0
    %386 = vmatpush.msra.mxu0 0.0
    %387 = vmatpush.msra.mxu0 0.0
    %388 = vmatpush.msra.mxu0 0.0
    %389 = vmatpush.msra.mxu0 0.0
    %390 = vmatpush.msra.mxu0 %v178
    %391 = vmatpush.msra.mxu0 %v176
    %392 = vmatpush.msra.mxu0 %v174
    %393 = vmatpush.msra.mxu0 %v172
    %394 = vmatmul.f32.gmra.mxu0 %v326
    %v395 = vpop.f32.mrf.mxu0
    %v396 = vadd.f32 0.0, %v395
    %397 = vdwg.mxu0
    %v399 = vrot.slane %v396, 6
    %400 = vrot.lane.b32.xlu0 %v399, 64
    %v401 = vpop.permute.xlu0 %400
    %v403 = vadd.f32 %v96, %v401
    %404 = vmatpush.msra.mxu0 0.0
    %405 = vmatpush.msra.mxu0 0.0
    %406 = vmatpush.msra.mxu0 0.0
    %407 = vmatpush.msra.mxu0 0.0
    %408 = vmatpush.msra.mxu0 0.0
    %409 = vmatpush.msra.mxu0 0.0
    %410 = vmatpush.msra.mxu0 0.0
    %411 = vmatpush.msra.mxu0 0.0
    %412 = vmatpush.msra.mxu0 0.0
    %413 = vmatpush.msra.mxu0 0.0
    %414 = vmatpush.msra.mxu0 0.0
    %415 = vmatpush.msra.mxu0 0.0
    %416 = vmatpush.msra.mxu0 %v215
    %417 = vmatpush.msra.mxu0 %v213
    %418 = vmatpush.msra.mxu0 %v211
    %419 = vmatpush.msra.mxu0 %v209
    %420 = vmatmul.f32.gmra.mxu0 %v326
    %v421 = vpop.f32.mrf.mxu0
    %v422 = vadd.f32 0.0, %v421
    %423 = vdwg.mxu0
    %v425 = vrot.slane %v422, 6
    %426 = vrot.lane.b32.xlu0 %v425, 96
    %v427 = vpop.permute.xlu0 %426
    %v429 = vadd.f32 %v96, %v427
    %v430 = vxor.u32 %v351, 2147483648
    %v431 = vmul.f32 %v430, 1.442695
    %v432 = vpow.pop %v431
    %v433 = vadd.f32 %v432, 1.0
    %v434 = vrcp.pop %v433
    %v435 = vmul.f32 %v433, %v434
    %v436 = vsub.f32 1.0, %v435
    %v437 = vmul.f32 %v434, %v436
    %v438 = vadd.f32 %v434, %v437
    %vm439 = vweird.f32 %v433
    %vm440 = vweird.f32 %v434
    %vm441 = vmor %vm439, %vm440
    %v442 = vsel %vm441, %v434, %v438
    %v443 = vand.u32 2147483647, %v433
    %vm444 = vcmp.eq.f32.partialorder %v443, 8.507059e+37
    %v445 = vand.u32 %v433, 2147483648
    %v446 = vor.u32 1.1754944e-38, %v445
    %v447 = vsel %vm444, %v446, %v442
    %v448 = vmul.f32 1.0, %v447
    %v449 = vxor.u32 %v377, 2147483648
    %v450 = vmul.f32 %v449, 1.442695
    %v451 = vpow.pop %v450
    %v452 = vadd.f32 %v451, 1.0
    %v453 = vrcp.pop %v452
    %v454 = vmul.f32 %v452, %v453
    %v455 = vsub.f32 1.0, %v454
    %v456 = vmul.f32 %v453, %v455
    %v457 = vadd.f32 %v453, %v456
    %vm458 = vweird.f32 %v452
    %vm459 = vweird.f32 %v453
    %vm460 = vmor %vm458, %vm459
    %v461 = vsel %vm460, %v453, %v457
    %v462 = vand.u32 2147483647, %v452
    %vm463 = vcmp.eq.f32.partialorder %v462, 8.507059e+37
    %v464 = vand.u32 %v452, 2147483648
    %v465 = vor.u32 1.1754944e-38, %v464
    %v466 = vsel %vm463, %v465, %v461
    %v467 = vmul.f32 1.0, %v466
    %v468 = vtanh.pop %v403
    %v469 = vxor.u32 %v429, 2147483648
    %v470 = vmul.f32 %v469, 1.442695
    %v471 = vpow.pop %v470
    %v472 = vadd.f32 %v471, 1.0
    %v473 = vrcp.pop %v472
    %v474 = vmul.f32 %v472, %v473
    %v475 = vsub.f32 1.0, %v474
    %v476 = vmul.f32 %v473, %v475
    %v477 = vadd.f32 %v473, %v476
    %vm478 = vweird.f32 %v472
    %vm479 = vweird.f32 %v473
    %vm480 = vmor %vm478, %vm479
    %v481 = vsel %vm480, %v473, %v477
    %v482 = vand.u32 2147483647, %v472
    %vm483 = vcmp.eq.f32.partialorder %v482, 8.507059e+37
    %v484 = vand.u32 %v472, 2147483648
    %v485 = vor.u32 1.1754944e-38, %v484
    %v486 = vsel %vm483, %v485, %v481
    %v487 = vmul.f32 1.0, %v486
    %v489 = vrot.slane %v313, 6
    %v491 = vmul.f32 %v467, %v489
    %493 = vrot.lane.b32.xlu0 %v468, 64
    %v494 = vpop.permute.xlu0 %493
    %v496 = vmul.f32 %v448, %v494
    %498 = vrot.lane.b32.xlu0 %v496, 32
    %v499 = vpop.permute.xlu0 %498
    %v501 = vadd.f32 %v491, %v499
    %v502 = vtanh.pop %v501
    %504 = vrot.lane.b32.xlu0 %v502, 64
    %v505 = vpop.permute.xlu0 %504
    %v507 = vmul.f32 %v487, %v505
    %509 = vrot.lane.b32.xlu0 %v507, 32
    %v510 = vpop.permute.xlu0 %509
    %vm512 = vcmask 257026
    %513 = vst.msk [vmem:[#allocation2] sm:$0xc] %vm512, %v510
    %v514 = vrot.slane %v507, 2
    %515 = vrot.lane.b32.xlu0 %v514, 32
    %v516 = vpop.permute.xlu0 %515
    %v517 = vsel %vm105, %v516, 0
    %519 = vmatpush.msra.mxu0 0.0
    %520 = vmatpush.msra.mxu0 0.0
    %521 = vmatpush.msra.mxu0 0.0
    %522 = vmatpush.msra.mxu0 0.0
    %523 = vmatpush.msra.mxu0 0.0
    %524 = vmatpush.msra.mxu0 0.0
    %525 = vmatpush.msra.mxu0 0.0
    %526 = vmatpush.msra.mxu0 0.0
    %527 = vmatpush.msra.mxu0 0.0
    %528 = vmatpush.msra.mxu0 0.0
    %529 = vmatpush.msra.mxu0 0.0
    %530 = vmatpush.msra.mxu0 0.0
    %531 = vmatpush.msra.mxu0 %v104
    %532 = vmatpush.msra.mxu0 %v103
    %533 = vmatpush.msra.mxu0 %v102
    %534 = vmatpush.msra.mxu0 %v101
    %535 = vmatmul.f32.gmra.mxu0 %v517
    %v536 = vpop.f32.mrf.mxu0
    %v537 = vadd.f32 0.0, %v536
    %538 = vdwg.mxu0
    %v540 = vrot.slane %v537, 4
    %v542 = vadd.f32 %v96, %v540
    %543 = vmatpush.msra.mxu0 0.0
    %544 = vmatpush.msra.mxu0 0.0
    %545 = vmatpush.msra.mxu0 0.0
    %546 = vmatpush.msra.mxu0 0.0
    %547 = vmatpush.msra.mxu0 0.0
    %548 = vmatpush.msra.mxu0 0.0
    %549 = vmatpush.msra.mxu0 0.0
    %550 = vmatpush.msra.mxu0 0.0
    %551 = vmatpush.msra.mxu0 0.0
    %552 = vmatpush.msra.mxu0 0.0
    %553 = vmatpush.msra.mxu0 0.0
    %554 = vmatpush.msra.mxu0 0.0
    %555 = vmatpush.msra.mxu0 %v141
    %556 = vmatpush.msra.mxu0 %v139
    %557 = vmatpush.msra.mxu0 %v137
    %558 = vmatpush.msra.mxu0 %v135
    %559 = vmatmul.f32.gmra.mxu0 %v517
    %v560 = vpop.f32.mrf.mxu0
    %v561 = vadd.f32 0.0, %v560
    %562 = vdwg.mxu0
    %v564 = vrot.slane %v561, 4
    %565 = vrot.lane.b32.xlu0 %v564, 32
    %v566 = vpop.permute.xlu0 %565
    %v568 = vadd.f32 %v96, %v566
    %569 = vmatpush.msra.mxu0 0.0
    %570 = vmatpush.msra.mxu0 0.0
    %571 = vmatpush.msra.mxu0 0.0
    %572 = vmatpush.msra.mxu0 0.0
    %573 = vmatpush.msra.mxu0 0.0
    %574 = vmatpush.msra.mxu0 0.0
    %575 = vmatpush.msra.mxu0 0.0
    %576 = vmatpush.msra.mxu0 0.0
    %577 = vmatpush.msra.mxu0 0.0
    %578 = vmatpush.msra.mxu0 0.0
    %579 = vmatpush.msra.mxu0 0.0
    %580 = vmatpush.msra.mxu0 0.0
    %581 = vmatpush.msra.mxu0 %v178
    %582 = vmatpush.msra.mxu0 %v176
    %583 = vmatpush.msra.mxu0 %v174
    %584 = vmatpush.msra.mxu0 %v172
    %585 = vmatmul.f32.gmra.mxu0 %v517
    %v586 = vpop.f32.mrf.mxu0
    %v587 = vadd.f32 0.0, %v586
    %588 = vdwg.mxu0
    %v590 = vrot.slane %v587, 4
    %591 = vrot.lane.b32.xlu0 %v590, 64
    %v592 = vpop.permute.xlu0 %591
    %v594 = vadd.f32 %v96, %v592
    %595 = vmatpush.msra.mxu0 0.0
    %596 = vmatpush.msra.mxu0 0.0
    %597 = vmatpush.msra.mxu0 0.0
    %598 = vmatpush.msra.mxu0 0.0
    %599 = vmatpush.msra.mxu0 0.0
    %600 = vmatpush.msra.mxu0 0.0
    %601 = vmatpush.msra.mxu0 0.0
    %602 = vmatpush.msra.mxu0 0.0
    %603 = vmatpush.msra.mxu0 0.0
    %604 = vmatpush.msra.mxu0 0.0
    %605 = vmatpush.msra.mxu0 0.0
    %606 = vmatpush.msra.mxu0 0.0
    %607 = vmatpush.msra.mxu0 %v215
    %608 = vmatpush.msra.mxu0 %v213
    %609 = vmatpush.msra.mxu0 %v211
    %610 = vmatpush.msra.mxu0 %v209
    %611 = vmatmul.f32.gmra.mxu0 %v517
    %v612 = vpop.f32.mrf.mxu0
    %v613 = vadd.f32 0.0, %v612
    %614 = vdwg.mxu0
    %v616 = vrot.slane %v613, 4
    %617 = vrot.lane.b32.xlu0 %v616, 96
    %v618 = vpop.permute.xlu0 %617
    %v620 = vadd.f32 %v96, %v618
    %v621 = vxor.u32 %v542, 2147483648
    %v622 = vmul.f32 %v621, 1.442695
    %v623 = vpow.pop %v622
    %v624 = vadd.f32 %v623, 1.0
    %v625 = vrcp.pop %v624
    %v626 = vmul.f32 %v624, %v625
    %v627 = vsub.f32 1.0, %v626
    %v628 = vmul.f32 %v625, %v627
    %v629 = vadd.f32 %v625, %v628
    %vm630 = vweird.f32 %v624
    %vm631 = vweird.f32 %v625
    %vm632 = vmor %vm630, %vm631
    %v633 = vsel %vm632, %v625, %v629
    %v634 = vand.u32 2147483647, %v624
    %vm635 = vcmp.eq.f32.partialorder %v634, 8.507059e+37
    %v636 = vand.u32 %v624, 2147483648
    %v637 = vor.u32 1.1754944e-38, %v636
    %v638 = vsel %vm635, %v637, %v633
    %v639 = vmul.f32 1.0, %v638
    %v640 = vxor.u32 %v568, 2147483648
    %v641 = vmul.f32 %v640, 1.442695
    %v642 = vpow.pop %v641
    %v643 = vadd.f32 %v642, 1.0
    %v644 = vrcp.pop %v643
    %v645 = vmul.f32 %v643, %v644
    %v646 = vsub.f32 1.0, %v645
    %v647 = vmul.f32 %v644, %v646
    %v648 = vadd.f32 %v644, %v647
    %vm649 = vweird.f32 %v643
    %vm650 = vweird.f32 %v644
    %vm651 = vmor %vm649, %vm650
    %v652 = vsel %vm651, %v644, %v648
    %v653 = vand.u32 2147483647, %v643
    %vm654 = vcmp.eq.f32.partialorder %v653, 8.507059e+37
    %v655 = vand.u32 %v643, 2147483648
    %v656 = vor.u32 1.1754944e-38, %v655
    %v657 = vsel %vm654, %v656, %v652
    %v658 = vmul.f32 1.0, %v657
    %v659 = vtanh.pop %v594
    %v660 = vxor.u32 %v620, 2147483648
    %v661 = vmul.f32 %v660, 1.442695
    %v662 = vpow.pop %v661
    %v663 = vadd.f32 %v662, 1.0
    %v664 = vrcp.pop %v663
    %v665 = vmul.f32 %v663, %v664
    %v666 = vsub.f32 1.0, %v665
    %v667 = vmul.f32 %v664, %v666
    %v668 = vadd.f32 %v664, %v667
    %vm669 = vweird.f32 %v663
    %vm670 = vweird.f32 %v664
    %vm671 = vmor %vm669, %vm670
    %v672 = vsel %vm671, %v664, %v668
    %v673 = vand.u32 2147483647, %v663
    %vm674 = vcmp.eq.f32.partialorder %v673, 8.507059e+37
    %v675 = vand.u32 %v663, 2147483648
    %v676 = vor.u32 1.1754944e-38, %v675
    %v677 = vsel %vm674, %v676, %v672
    %v678 = vmul.f32 1.0, %v677
    %v680 = vrot.slane %v501, 6
    %v682 = vmul.f32 %v658, %v680
    %684 = vrot.lane.b32.xlu0 %v659, 64
    %v685 = vpop.permute.xlu0 %684
    %v687 = vmul.f32 %v639, %v685
    %689 = vrot.lane.b32.xlu0 %v687, 32
    %v690 = vpop.permute.xlu0 %689
    %v692 = vadd.f32 %v682, %v690
    %v693 = vtanh.pop %v692
    %695 = vrot.lane.b32.xlu0 %v693, 64
    %v696 = vpop.permute.xlu0 %695
    %v698 = vmul.f32 %v678, %v696
    %700 = vrot.lane.b32.xlu0 %v698, 32
    %v701 = vpop.permute.xlu0 %700
    %vm703 = vcmask 259076
    %704 = vst.msk [vmem:[#allocation2] sm:$0x30] %vm703, %v701
    %v705 = vrot.slane %v698, 4
    %706 = vrot.lane.b32.xlu0 %v705, 32
    %v707 = vpop.permute.xlu0 %706
    %v708 = vsel %vm105, %v707, 0
    %710 = vmatpush.msra.mxu0 0.0
    %711 = vmatpush.msra.mxu0 0.0
    %712 = vmatpush.msra.mxu0 0.0
    %713 = vmatpush.msra.mxu0 0.0
    %714 = vmatpush.msra.mxu0 0.0
    %715 = vmatpush.msra.mxu0 0.0
    %716 = vmatpush.msra.mxu0 0.0
    %717 = vmatpush.msra.mxu0 0.0
    %718 = vmatpush.msra.mxu0 0.0
    %719 = vmatpush.msra.mxu0 0.0
    %720 = vmatpush.msra.mxu0 0.0
    %721 = vmatpush.msra.mxu0 0.0
    %722 = vmatpush.msra.mxu0 %v104
    %723 = vmatpush.msra.mxu0 %v103
    %724 = vmatpush.msra.mxu0 %v102
    %725 = vmatpush.msra.mxu0 %v101
    %726 = vmatmul.f32.gmra.mxu0 %v708
    %v727 = vpop.f32.mrf.mxu0
    %v728 = vadd.f32 0.0, %v727
    %729 = vdwg.mxu0
    %v731 = vrot.slane %v728, 2
    %v733 = vadd.f32 %v96, %v731
    %734 = vmatpush.msra.mxu0 0.0
    %735 = vmatpush.msra.mxu0 0.0
    %736 = vmatpush.msra.mxu0 0.0
    %737 = vmatpush.msra.mxu0 0.0
    %738 = vmatpush.msra.mxu0 0.0
    %739 = vmatpush.msra.mxu0 0.0
    %740 = vmatpush.msra.mxu0 0.0
    %741 = vmatpush.msra.mxu0 0.0
    %742 = vmatpush.msra.mxu0 0.0
    %743 = vmatpush.msra.mxu0 0.0
    %744 = vmatpush.msra.mxu0 0.0
    %745 = vmatpush.msra.mxu0 0.0
    %746 = vmatpush.msra.mxu0 %v141
    %747 = vmatpush.msra.mxu0 %v139
    %748 = vmatpush.msra.mxu0 %v137
    %749 = vmatpush.msra.mxu0 %v135
    %750 = vmatmul.f32.gmra.mxu0 %v708
    %v751 = vpop.f32.mrf.mxu0
    %v752 = vadd.f32 0.0, %v751
    %753 = vdwg.mxu0
    %v755 = vrot.slane %v752, 2
    %756 = vrot.lane.b32.xlu0 %v755, 32
    %v757 = vpop.permute.xlu0 %756
    %v759 = vadd.f32 %v96, %v757
    %760 = vmatpush.msra.mxu0 0.0
    %761 = vmatpush.msra.mxu0 0.0
    %762 = vmatpush.msra.mxu0 0.0
    %763 = vmatpush.msra.mxu0 0.0
    %764 = vmatpush.msra.mxu0 0.0
    %765 = vmatpush.msra.mxu0 0.0
    %766 = vmatpush.msra.mxu0 0.0
    %767 = vmatpush.msra.mxu0 0.0
    %768 = vmatpush.msra.mxu0 0.0
    %769 = vmatpush.msra.mxu0 0.0
    %770 = vmatpush.msra.mxu0 0.0
    %771 = vmatpush.msra.mxu0 0.0
    %772 = vmatpush.msra.mxu0 %v178
    %773 = vmatpush.msra.mxu0 %v176
    %774 = vmatpush.msra.mxu0 %v174
    %775 = vmatpush.msra.mxu0 %v172
    %776 = vmatmul.f32.gmra.mxu0 %v708
    %v777 = vpop.f32.mrf.mxu0
    %v778 = vadd.f32 0.0, %v777
    %779 = vdwg.mxu0
    %v781 = vrot.slane %v778, 2
    %782 = vrot.lane.b32.xlu0 %v781, 64
    %v783 = vpop.permute.xlu0 %782
    %v785 = vadd.f32 %v96, %v783
    %786 = vmatpush.msra.mxu0 0.0
    %787 = vmatpush.msra.mxu0 0.0
    %788 = vmatpush.msra.mxu0 0.0
    %789 = vmatpush.msra.mxu0 0.0
    %790 = vmatpush.msra.mxu0 0.0
    %791 = vmatpush.msra.mxu0 0.0
    %792 = vmatpush.msra.mxu0 0.0
    %793 = vmatpush.msra.mxu0 0.0
    %794 = vmatpush.msra.mxu0 0.0
    %795 = vmatpush.msra.mxu0 0.0
    %796 = vmatpush.msra.mxu0 0.0
    %797 = vmatpush.msra.mxu0 0.0
    %798 = vmatpush.msra.mxu0 %v215
    %799 = vmatpush.msra.mxu0 %v213
    %800 = vmatpush.msra.mxu0 %v211
    %801 = vmatpush.msra.mxu0 %v209
    %802 = vmatmul.f32.gmra.mxu0 %v708
    %v803 = vpop.f32.mrf.mxu0
    %v804 = vadd.f32 0.0, %v803
    %805 = vdwg.mxu0
    %v807 = vrot.slane %v804, 2
    %808 = vrot.lane.b32.xlu0 %v807, 96
    %v809 = vpop.permute.xlu0 %808
    %v811 = vadd.f32 %v96, %v809
    %v812 = vxor.u32 %v733, 2147483648
    %v813 = vmul.f32 %v812, 1.442695
    %v814 = vpow.pop %v813
    %v815 = vadd.f32 %v814, 1.0
    %v816 = vrcp.pop %v815
    %v817 = vmul.f32 %v815, %v816
    %v818 = vsub.f32 1.0, %v817
    %v819 = vmul.f32 %v816, %v818
    %v820 = vadd.f32 %v816, %v819
    %vm821 = vweird.f32 %v815
    %vm822 = vweird.f32 %v816
    %vm823 = vmor %vm821, %vm822
    %v824 = vsel %vm823, %v816, %v820
    %v825 = vand.u32 2147483647, %v815
    %vm826 = vcmp.eq.f32.partialorder %v825, 8.507059e+37
    %v827 = vand.u32 %v815, 2147483648
    %v828 = vor.u32 1.1754944e-38, %v827
    %v829 = vsel %vm826, %v828, %v824
    %v830 = vmul.f32 1.0, %v829
    %v831 = vxor.u32 %v759, 2147483648
    %v832 = vmul.f32 %v831, 1.442695
    %v833 = vpow.pop %v832
    %v834 = vadd.f32 %v833, 1.0
    %v835 = vrcp.pop %v834
    %v836 = vmul.f32 %v834, %v835
    %v837 = vsub.f32 1.0, %v836
    %v838 = vmul.f32 %v835, %v837
    %v839 = vadd.f32 %v835, %v838
    %vm840 = vweird.f32 %v834
    %vm841 = vweird.f32 %v835
    %vm842 = vmor %vm840, %vm841
    %v843 = vsel %vm842, %v835, %v839
    %v844 = vand.u32 2147483647, %v834
    %vm845 = vcmp.eq.f32.partialorder %v844, 8.507059e+37
    %v846 = vand.u32 %v834, 2147483648
    %v847 = vor.u32 1.1754944e-38, %v846
    %v848 = vsel %vm845, %v847, %v843
    %v849 = vmul.f32 1.0, %v848
    %v850 = vtanh.pop %v785
    %v851 = vxor.u32 %v811, 2147483648
    %v852 = vmul.f32 %v851, 1.442695
    %v853 = vpow.pop %v852
    %v854 = vadd.f32 %v853, 1.0
    %v855 = vrcp.pop %v854
    %v856 = vmul.f32 %v854, %v855
    %v857 = vsub.f32 1.0, %v856
    %v858 = vmul.f32 %v855, %v857
    %v859 = vadd.f32 %v855, %v858
    %vm860 = vweird.f32 %v854
    %vm861 = vweird.f32 %v855
    %vm862 = vmor %vm860, %vm861
    %v863 = vsel %vm862, %v855, %v859
    %v864 = vand.u32 2147483647, %v854
    %vm865 = vcmp.eq.f32.partialorder %v864, 8.507059e+37
    %v866 = vand.u32 %v854, 2147483648
    %v867 = vor.u32 1.1754944e-38, %v866
    %v868 = vsel %vm865, %v867, %v863
    %v869 = vmul.f32 1.0, %v868
    %v871 = vrot.slane %v692, 6
    %v873 = vmul.f32 %v849, %v871
    %875 = vrot.lane.b32.xlu0 %v850, 64
    %v876 = vpop.permute.xlu0 %875
    %v878 = vmul.f32 %v830, %v876
    %880 = vrot.lane.b32.xlu0 %v878, 32
    %v881 = vpop.permute.xlu0 %880
    %v883 = vadd.f32 %v873, %v881
    %v884 = vtanh.pop %v883
    %886 = vrot.lane.b32.xlu0 %v884, 64
    %v887 = vpop.permute.xlu0 %886
    %v889 = vmul.f32 %v869, %v887
    %891 = vrot.lane.b32.xlu0 %v889, 32
    %v892 = vpop.permute.xlu0 %891
    %vm894 = vcmask 261126
    %895 = vst.msk [vmem:[#allocation2] sm:$0xc0] %vm894, %v892
    %v896 = vrot.slane %v889, 6
    %897 = vrot.lane.b32.xlu0 %v896, 32
    %v898 = vpop.permute.xlu0 %897
    %v899 = vsel %vm105, %v898, 0
    %901 = vmatpush.msra.mxu0 0.0
    %902 = vmatpush.msra.mxu0 0.0
    %903 = vmatpush.msra.mxu0 0.0
    %904 = vmatpush.msra.mxu0 0.0
    %905 = vmatpush.msra.mxu0 0.0
    %906 = vmatpush.msra.mxu0 0.0
    %907 = vmatpush.msra.mxu0 0.0
    %908 = vmatpush.msra.mxu0 0.0
    %909 = vmatpush.msra.mxu0 0.0
    %910 = vmatpush.msra.mxu0 0.0
    %911 = vmatpush.msra.mxu0 0.0
    %912 = vmatpush.msra.mxu0 0.0
    %913 = vmatpush.msra.mxu0 %v104
    %914 = vmatpush.msra.mxu0 %v103
    %915 = vmatpush.msra.mxu0 %v102
    %916 = vmatpush.msra.mxu0 %v101
    %917 = vmatmul.f32.gmra.mxu0 %v899
    %v918 = vpop.f32.mrf.mxu0
    %v919 = vadd.f32 0.0, %v918
    %920 = vdwg.mxu0
    %v921 = vadd.f32 %v99, %v919
    %922 = vmatpush.msra.mxu0 0.0
    %923 = vmatpush.msra.mxu0 0.0
    %924 = vmatpush.msra.mxu0 0.0
    %925 = vmatpush.msra.mxu0 0.0
    %926 = vmatpush.msra.mxu0 0.0
    %927 = vmatpush.msra.mxu0 0.0
    %928 = vmatpush.msra.mxu0 0.0
    %929 = vmatpush.msra.mxu0 0.0
    %930 = vmatpush.msra.mxu0 0.0
    %931 = vmatpush.msra.mxu0 0.0
    %932 = vmatpush.msra.mxu0 0.0
    %933 = vmatpush.msra.mxu0 0.0
    %934 = vmatpush.msra.mxu0 %v141
    %935 = vmatpush.msra.mxu0 %v139
    %936 = vmatpush.msra.mxu0 %v137
    %937 = vmatpush.msra.mxu0 %v135
    %938 = vmatmul.f32.gmra.mxu0 %v899
    %v939 = vpop.f32.mrf.mxu0
    %v940 = vadd.f32 0.0, %v939
    %941 = vdwg.mxu0
    %943 = vrot.lane.b32.xlu0 %v940, 32
    %v944 = vpop.permute.xlu0 %943
    %v946 = vadd.f32 %v99, %v944
    %947 = vmatpush.msra.mxu0 0.0
    %948 = vmatpush.msra.mxu0 0.0
    %949 = vmatpush.msra.mxu0 0.0
    %950 = vmatpush.msra.mxu0 0.0
    %951 = vmatpush.msra.mxu0 0.0
    %952 = vmatpush.msra.mxu0 0.0
    %953 = vmatpush.msra.mxu0 0.0
    %954 = vmatpush.msra.mxu0 0.0
    %955 = vmatpush.msra.mxu0 0.0
    %956 = vmatpush.msra.mxu0 0.0
    %957 = vmatpush.msra.mxu0 0.0
    %958 = vmatpush.msra.mxu0 0.0
    %959 = vmatpush.msra.mxu0 %v178
    %960 = vmatpush.msra.mxu0 %v176
    %961 = vmatpush.msra.mxu0 %v174
    %962 = vmatpush.msra.mxu0 %v172
    %963 = vmatmul.f32.gmra.mxu0 %v899
    %v964 = vpop.f32.mrf.mxu0
    %v965 = vadd.f32 0.0, %v964
    %966 = vdwg.mxu0
    %968 = vrot.lane.b32.xlu0 %v965, 64
    %v969 = vpop.permute.xlu0 %968
    %v971 = vadd.f32 %v99, %v969
    %972 = vmatpush.msra.mxu0 0.0
    %973 = vmatpush.msra.mxu0 0.0
    %974 = vmatpush.msra.mxu0 0.0
    %975 = vmatpush.msra.mxu0 0.0
    %976 = vmatpush.msra.mxu0 0.0
    %977 = vmatpush.msra.mxu0 0.0
    %978 = vmatpush.msra.mxu0 0.0
    %979 = vmatpush.msra.mxu0 0.0
    %980 = vmatpush.msra.mxu0 0.0
    %981 = vmatpush.msra.mxu0 0.0
    %982 = vmatpush.msra.mxu0 0.0
    %983 = vmatpush.msra.mxu0 0.0
    %984 = vmatpush.msra.mxu0 %v215
    %985 = vmatpush.msra.mxu0 %v213
    %986 = vmatpush.msra.mxu0 %v211
    %987 = vmatpush.msra.mxu0 %v209
    %988 = vmatmul.f32.gmra.mxu0 %v899
    %v989 = vpop.f32.mrf.mxu0
    %v990 = vadd.f32 0.0, %v989
    %991 = vdwg.mxu0
    %993 = vrot.lane.b32.xlu0 %v990, 96
    %v994 = vpop.permute.xlu0 %993
    %v996 = vadd.f32 %v99, %v994
    %v997 = vxor.u32 %v921, 2147483648
    %v998 = vmul.f32 %v997, 1.442695
    %v999 = vpow.pop %v998
    %v1000 = vadd.f32 %v999, 1.0
    %v1001 = vrcp.pop %v1000
    %v1002 = vmul.f32 %v1000, %v1001
    %v1003 = vsub.f32 1.0, %v1002
    %v1004 = vmul.f32 %v1001, %v1003
    %v1005 = vadd.f32 %v1001, %v1004
    %vm1006 = vweird.f32 %v1000
    %vm1007 = vweird.f32 %v1001
    %vm1008 = vmor %vm1006, %vm1007
    %v1009 = vsel %vm1008, %v1001, %v1005
    %v1010 = vand.u32 2147483647, %v1000
    %vm1011 = vcmp.eq.f32.partialorder %v1010, 8.507059e+37
    %v1012 = vand.u32 %v1000, 2147483648
    %v1013 = vor.u32 1.1754944e-38, %v1012
    %v1014 = vsel %vm1011, %v1013, %v1009
    %v1015 = vmul.f32 1.0, %v1014
    %v1016 = vxor.u32 %v946, 2147483648
    %v1017 = vmul.f32 %v1016, 1.442695
    %v1018 = vpow.pop %v1017
    %v1019 = vadd.f32 %v1018, 1.0
    %v1020 = vrcp.pop %v1019
    %v1021 = vmul.f32 %v1019, %v1020
    %v1022 = vsub.f32 1.0, %v1021
    %v1023 = vmul.f32 %v1020, %v1022
    %v1024 = vadd.f32 %v1020, %v1023
    %vm1025 = vweird.f32 %v1019
    %vm1026 = vweird.f32 %v1020
    %vm1027 = vmor %vm1025, %vm1026
    %v1028 = vsel %vm1027, %v1020, %v1024
    %v1029 = vand.u32 2147483647, %v1019
    %vm1030 = vcmp.eq.f32.partialorder %v1029, 8.507059e+37
    %v1031 = vand.u32 %v1019, 2147483648
    %v1032 = vor.u32 1.1754944e-38, %v1031
    %v1033 = vsel %vm1030, %v1032, %v1028
    %v1034 = vmul.f32 1.0, %v1033
    %v1035 = vtanh.pop %v971
    %v1036 = vxor.u32 %v996, 2147483648
    %v1037 = vmul.f32 %v1036, 1.442695
    %v1038 = vpow.pop %v1037
    %v1039 = vadd.f32 %v1038, 1.0
    %v1040 = vrcp.pop %v1039
    %v1041 = vmul.f32 %v1039, %v1040
    %v1042 = vsub.f32 1.0, %v1041
    %v1043 = vmul.f32 %v1040, %v1042
    %v1044 = vadd.f32 %v1040, %v1043
    %vm1045 = vweird.f32 %v1039
    %vm1046 = vweird.f32 %v1040
    %vm1047 = vmor %vm1045, %vm1046
    %v1048 = vsel %vm1047, %v1040, %v1044
    %v1049 = vand.u32 2147483647, %v1039
    %vm1050 = vcmp.eq.f32.partialorder %v1049, 8.507059e+37
    %v1051 = vand.u32 %v1039, 2147483648
    %v1052 = vor.u32 1.1754944e-38, %v1051
    %v1053 = vsel %vm1050, %v1052, %v1048
    %v1054 = vmul.f32 1.0, %v1053
    %v1056 = vrot.slane %v883, 6
    %v1058 = vmul.f32 %v1034, %v1056
    %1060 = vrot.lane.b32.xlu0 %v1035, 64
    %v1061 = vpop.permute.xlu0 %1060
    %v1063 = vmul.f32 %v1015, %v1061
    %1065 = vrot.lane.b32.xlu0 %v1063, 32
    %v1066 = vpop.permute.xlu0 %1065
    %v1068 = vadd.f32 %v1058, %v1066
    %v1069 = vtanh.pop %v1068
    %1071 = vrot.lane.b32.xlu0 %v1069, 64
    %v1072 = vpop.permute.xlu0 %1071
    %v1074 = vmul.f32 %v1054, %v1072
    %1076 = vrot.lane.b32.xlu0 %v1074, 32
    %v1077 = vpop.permute.xlu0 %1076
    %1079 = vst.msk [vmem:[#allocation2 + $0x8] sm:$0x3] %vm324, %v1077
    %v1080 = vsel %vm105, %v1077, 0
    %1082 = vmatpush.msra.mxu0 0.0
    %1083 = vmatpush.msra.mxu0 0.0
    %1084 = vmatpush.msra.mxu0 0.0
    %1085 = vmatpush.msra.mxu0 0.0
    %1086 = vmatpush.msra.mxu0 0.0
    %1087 = vmatpush.msra.mxu0 0.0
    %1088 = vmatpush.msra.mxu0 0.0
    %1089 = vmatpush.msra.mxu0 0.0
    %1090 = vmatpush.msra.mxu0 0.0
    %1091 = vmatpush.msra.mxu0 0.0
    %1092 = vmatpush.msra.mxu0 0.0
    %1093 = vmatpush.msra.mxu0 0.0
    %1094 = vmatpush.msra.mxu0 %v104
    %1095 = vmatpush.msra.mxu0 %v103
    %1096 = vmatpush.msra.mxu0 %v102
    %1097 = vmatpush.msra.mxu0 %v101
    %1098 = vmatmul.f32.gmra.mxu0 %v1080
    %v1099 = vpop.f32.mrf.mxu0
    %v1100 = vadd.f32 0.0, %v1099
    %1101 = vdwg.mxu0
    %v1103 = vrot.slane %v1100, 6
    %v1105 = vadd.f32 %v99, %v1103
    %1106 = vmatpush.msra.mxu0 0.0
    %1107 = vmatpush.msra.mxu0 0.0
    %1108 = vmatpush.msra.mxu0 0.0
    %1109 = vmatpush.msra.mxu0 0.0
    %1110 = vmatpush.msra.mxu0 0.0
    %1111 = vmatpush.msra.mxu0 0.0
    %1112 = vmatpush.msra.mxu0 0.0
    %1113 = vmatpush.msra.mxu0 0.0
    %1114 = vmatpush.msra.mxu0 0.0
    %1115 = vmatpush.msra.mxu0 0.0
    %1116 = vmatpush.msra.mxu0 0.0
    %1117 = vmatpush.msra.mxu0 0.0
    %1118 = vmatpush.msra.mxu0 %v141
    %1119 = vmatpush.msra.mxu0 %v139
    %1120 = vmatpush.msra.mxu0 %v137
    %1121 = vmatpush.msra.mxu0 %v135
    %1122 = vmatmul.f32.gmra.mxu0 %v1080
    %v1123 = vpop.f32.mrf.mxu0
    %v1124 = vadd.f32 0.0, %v1123
    %1125 = vdwg.mxu0
    %v1127 = vrot.slane %v1124, 6
    %1128 = vrot.lane.b32.xlu0 %v1127, 32
    %v1129 = vpop.permute.xlu0 %1128
    %v1131 = vadd.f32 %v99, %v1129
    %1132 = vmatpush.msra.mxu0 0.0
    %1133 = vmatpush.msra.mxu0 0.0
    %1134 = vmatpush.msra.mxu0 0.0
    %1135 = vmatpush.msra.mxu0 0.0
    %1136 = vmatpush.msra.mxu0 0.0
    %1137 = vmatpush.msra.mxu0 0.0
    %1138 = vmatpush.msra.mxu0 0.0
    %1139 = vmatpush.msra.mxu0 0.0
    %1140 = vmatpush.msra.mxu0 0.0
    %1141 = vmatpush.msra.mxu0 0.0
    %1142 = vmatpush.msra.mxu0 0.0
    %1143 = vmatpush.msra.mxu0 0.0
    %1144 = vmatpush.msra.mxu0 %v178
    %1145 = vmatpush.msra.mxu0 %v176
    %1146 = vmatpush.msra.mxu0 %v174
    %1147 = vmatpush.msra.mxu0 %v172
    %1148 = vmatmul.f32.gmra.mxu0 %v1080
    %v1149 = vpop.f32.mrf.mxu0
    %v1150 = vadd.f32 0.0, %v1149
    %1151 = vdwg.mxu0
    %v1153 = vrot.slane %v1150, 6
    %1154 = vrot.lane.b32.xlu0 %v1153, 64
    %v1155 = vpop.permute.xlu0 %1154
    %v1157 = vadd.f32 %v99, %v1155
    %1158 = vmatpush.msra.mxu0 0.0
    %1159 = vmatpush.msra.mxu0 0.0
    %1160 = vmatpush.msra.mxu0 0.0
    %1161 = vmatpush.msra.mxu0 0.0
    %1162 = vmatpush.msra.mxu0 0.0
    %1163 = vmatpush.msra.mxu0 0.0
    %1164 = vmatpush.msra.mxu0 0.0
    %1165 = vmatpush.msra.mxu0 0.0
    %1166 = vmatpush.msra.mxu0 0.0
    %1167 = vmatpush.msra.mxu0 0.0
    %1168 = vmatpush.msra.mxu0 0.0
    %1169 = vmatpush.msra.mxu0 0.0
    %1170 = vmatpush.msra.mxu0 %v215
    %1171 = vmatpush.msra.mxu0 %v213
    %1172 = vmatpush.msra.mxu0 %v211
    %1173 = vmatpush.msra.mxu0 %v209
    %1174 = vmatmul.f32.gmra.mxu0 %v1080
    %v1175 = vpop.f32.mrf.mxu0
    %v1176 = vadd.f32 0.0, %v1175
    %1177 = vdwg.mxu0
    %v1179 = vrot.slane %v1176, 6
    %1180 = vrot.lane.b32.xlu0 %v1179, 96
    %v1181 = vpop.permute.xlu0 %1180
    %v1183 = vadd.f32 %v99, %v1181
    %v1184 = vxor.u32 %v1105, 2147483648
    %v1185 = vmul.f32 %v1184, 1.442695
    %v1186 = vpow.pop %v1185
    %v1187 = vadd.f32 %v1186, 1.0
    %v1188 = vrcp.pop %v1187
    %v1189 = vmul.f32 %v1187, %v1188
    %v1190 = vsub.f32 1.0, %v1189
    %v1191 = vmul.f32 %v1188, %v1190
    %v1192 = vadd.f32 %v1188, %v1191
    %vm1193 = vweird.f32 %v1187
    %vm1194 = vweird.f32 %v1188
    %vm1195 = vmor %vm1193, %vm1194
    %v1196 = vsel %vm1195, %v1188, %v1192
    %v1197 = vand.u32 2147483647, %v1187
    %vm1198 = vcmp.eq.f32.partialorder %v1197, 8.507059e+37
    %v1199 = vand.u32 %v1187, 2147483648
    %v1200 = vor.u32 1.1754944e-38, %v1199
    %v1201 = vsel %vm1198, %v1200, %v1196
    %v1202 = vmul.f32 1.0, %v1201
    %v1203 = vxor.u32 %v1131, 2147483648
    %v1204 = vmul.f32 %v1203, 1.442695
    %v1205 = vpow.pop %v1204
    %v1206 = vadd.f32 %v1205, 1.0
    %v1207 = vrcp.pop %v1206
    %v1208 = vmul.f32 %v1206, %v1207
    %v1209 = vsub.f32 1.0, %v1208
    %v1210 = vmul.f32 %v1207, %v1209
    %v1211 = vadd.f32 %v1207, %v1210
    %vm1212 = vweird.f32 %v1206
    %vm1213 = vweird.f32 %v1207
    %vm1214 = vmor %vm1212, %vm1213
    %v1215 = vsel %vm1214, %v1207, %v1211
    %v1216 = vand.u32 2147483647, %v1206
    %vm1217 = vcmp.eq.f32.partialorder %v1216, 8.507059e+37
    %v1218 = vand.u32 %v1206, 2147483648
    %v1219 = vor.u32 1.1754944e-38, %v1218
    %v1220 = vsel %vm1217, %v1219, %v1215
    %v1221 = vmul.f32 1.0, %v1220
    %v1222 = vtanh.pop %v1157
    %v1223 = vxor.u32 %v1183, 2147483648
    %v1224 = vmul.f32 %v1223, 1.442695
    %v1225 = vpow.pop %v1224
    %v1226 = vadd.f32 %v1225, 1.0
    %v1227 = vrcp.pop %v1226
    %v1228 = vmul.f32 %v1226, %v1227
    %v1229 = vsub.f32 1.0, %v1228
    %v1230 = vmul.f32 %v1227, %v1229
    %v1231 = vadd.f32 %v1227, %v1230
    %vm1232 = vweird.f32 %v1226
    %vm1233 = vweird.f32 %v1227
    %vm1234 = vmor %vm1232, %vm1233
    %v1235 = vsel %vm1234, %v1227, %v1231
    %v1236 = vand.u32 2147483647, %v1226
    %vm1237 = vcmp.eq.f32.partialorder %v1236, 8.507059e+37
    %v1238 = vand.u32 %v1226, 2147483648
    %v1239 = vor.u32 1.1754944e-38, %v1238
    %v1240 = vsel %vm1237, %v1239, %v1235
    %v1241 = vmul.f32 1.0, %v1240
    %v1243 = vrot.slane %v1068, 6
    %v1245 = vmul.f32 %v1221, %v1243
    %1247 = vrot.lane.b32.xlu0 %v1222, 64
    %v1248 = vpop.permute.xlu0 %1247
    %v1250 = vmul.f32 %v1202, %v1248
    %1252 = vrot.lane.b32.xlu0 %v1250, 32
    %v1253 = vpop.permute.xlu0 %1252
    %v1255 = vadd.f32 %v1245, %v1253
    %v1256 = vtanh.pop %v1255
    %1258 = vrot.lane.b32.xlu0 %v1256, 64
    %v1259 = vpop.permute.xlu0 %1258
    %v1261 = vmul.f32 %v1241, %v1259
    %1263 = vrot.lane.b32.xlu0 %v1261, 32
    %v1264 = vpop.permute.xlu0 %1263
    %1266 = vst.msk [vmem:[#allocation2 + $0x8] sm:$0xc] %vm512, %v1264
    %v1267 = vrot.slane %v1261, 2
    %1268 = vrot.lane.b32.xlu0 %v1267, 32
    %v1269 = vpop.permute.xlu0 %1268
    %v1270 = vsel %vm105, %v1269, 0
    %1272 = vmatpush.msra.mxu0 0.0
    %1273 = vmatpush.msra.mxu0 0.0
    %1274 = vmatpush.msra.mxu0 0.0
    %1275 = vmatpush.msra.mxu0 0.0
    %1276 = vmatpush.msra.mxu0 0.0
    %1277 = vmatpush.msra.mxu0 0.0
    %1278 = vmatpush.msra.mxu0 0.0
    %1279 = vmatpush.msra.mxu0 0.0
    %1280 = vmatpush.msra.mxu0 0.0
    %1281 = vmatpush.msra.mxu0 0.0
    %1282 = vmatpush.msra.mxu0 0.0
    %1283 = vmatpush.msra.mxu0 0.0
    %1284 = vmatpush.msra.mxu0 %v104
    %1285 = vmatpush.msra.mxu0 %v103
    %1286 = vmatpush.msra.mxu0 %v102
    %1287 = vmatpush.msra.mxu0 %v101
    %1288 = vmatmul.f32.gmra.mxu0 %v1270
    %v1289 = vpop.f32.mrf.mxu0
    %v1290 = vadd.f32 0.0, %v1289
    %1291 = vdwg.mxu0
    %v1293 = vrot.slane %v1290, 4
    %v1295 = vadd.f32 %v99, %v1293
    %1296 = vmatpush.msra.mxu0 0.0
    %1297 = vmatpush.msra.mxu0 0.0
    %1298 = vmatpush.msra.mxu0 0.0
    %1299 = vmatpush.msra.mxu0 0.0
    %1300 = vmatpush.msra.mxu0 0.0
    %1301 = vmatpush.msra.mxu0 0.0
    %1302 = vmatpush.msra.mxu0 0.0
    %1303 = vmatpush.msra.mxu0 0.0
    %1304 = vmatpush.msra.mxu0 0.0
    %1305 = vmatpush.msra.mxu0 0.0
    %1306 = vmatpush.msra.mxu0 0.0
    %1307 = vmatpush.msra.mxu0 0.0
    %1308 = vmatpush.msra.mxu0 %v141
    %1309 = vmatpush.msra.mxu0 %v139
    %1310 = vmatpush.msra.mxu0 %v137
    %1311 = vmatpush.msra.mxu0 %v135
    %1312 = vmatmul.f32.gmra.mxu0 %v1270
    %v1313 = vpop.f32.mrf.mxu0
    %v1314 = vadd.f32 0.0, %v1313
    %1315 = vdwg.mxu0
    %v1317 = vrot.slane %v1314, 4
    %1318 = vrot.lane.b32.xlu0 %v1317, 32
    %v1319 = vpop.permute.xlu0 %1318
    %v1321 = vadd.f32 %v99, %v1319
    %1322 = vmatpush.msra.mxu0 0.0
    %1323 = vmatpush.msra.mxu0 0.0
    %1324 = vmatpush.msra.mxu0 0.0
    %1325 = vmatpush.msra.mxu0 0.0
    %1326 = vmatpush.msra.mxu0 0.0
    %1327 = vmatpush.msra.mxu0 0.0
    %1328 = vmatpush.msra.mxu0 0.0
    %1329 = vmatpush.msra.mxu0 0.0
    %1330 = vmatpush.msra.mxu0 0.0
    %1331 = vmatpush.msra.mxu0 0.0
    %1332 = vmatpush.msra.mxu0 0.0
    %1333 = vmatpush.msra.mxu0 0.0
    %1334 = vmatpush.msra.mxu0 %v178
    %1335 = vmatpush.msra.mxu0 %v176
    %1336 = vmatpush.msra.mxu0 %v174
    %1337 = vmatpush.msra.mxu0 %v172
    %1338 = vmatmul.f32.gmra.mxu0 %v1270
    %v1339 = vpop.f32.mrf.mxu0
    %v1340 = vadd.f32 0.0, %v1339
    %1341 = vdwg.mxu0
    %v1343 = vrot.slane %v1340, 4
    %1344 = vrot.lane.b32.xlu0 %v1343, 64
    %v1345 = vpop.permute.xlu0 %1344
    %v1347 = vadd.f32 %v99, %v1345
    %1348 = vmatpush.msra.mxu0 0.0
    %1349 = vmatpush.msra.mxu0 0.0
    %1350 = vmatpush.msra.mxu0 0.0
    %1351 = vmatpush.msra.mxu0 0.0
    %1352 = vmatpush.msra.mxu0 0.0
    %1353 = vmatpush.msra.mxu0 0.0
    %1354 = vmatpush.msra.mxu0 0.0
    %1355 = vmatpush.msra.mxu0 0.0
    %1356 = vmatpush.msra.mxu0 0.0
    %1357 = vmatpush.msra.mxu0 0.0
    %1358 = vmatpush.msra.mxu0 0.0
    %1359 = vmatpush.msra.mxu0 0.0
    %1360 = vmatpush.msra.mxu0 %v215
    %1361 = vmatpush.msra.mxu0 %v213
    %1362 = vmatpush.msra.mxu0 %v211
    %1363 = vmatpush.msra.mxu0 %v209
    %1364 = vmatmul.f32.gmra.mxu0 %v1270
    %v1365 = vpop.f32.mrf.mxu0
    %v1366 = vadd.f32 0.0, %v1365
    %1367 = vdwg.mxu0
    %v1369 = vrot.slane %v1366, 4
    %1370 = vrot.lane.b32.xlu0 %v1369, 96
    %v1371 = vpop.permute.xlu0 %1370
    %v1373 = vadd.f32 %v99, %v1371
    %v1374 = vxor.u32 %v1295, 2147483648
    %v1375 = vmul.f32 %v1374, 1.442695
    %v1376 = vpow.pop %v1375
    %v1377 = vadd.f32 %v1376, 1.0
    %v1378 = vrcp.pop %v1377
    %v1379 = vmul.f32 %v1377, %v1378
    %v1380 = vsub.f32 1.0, %v1379
    %v1381 = vmul.f32 %v1378, %v1380
    %v1382 = vadd.f32 %v1378, %v1381
    %vm1383 = vweird.f32 %v1377
    %vm1384 = vweird.f32 %v1378
    %vm1385 = vmor %vm1383, %vm1384
    %v1386 = vsel %vm1385, %v1378, %v1382
    %v1387 = vand.u32 2147483647, %v1377
    %vm1388 = vcmp.eq.f32.partialorder %v1387, 8.507059e+37
    %v1389 = vand.u32 %v1377, 2147483648
    %v1390 = vor.u32 1.1754944e-38, %v1389
    %v1391 = vsel %vm1388, %v1390, %v1386
    %v1392 = vmul.f32 1.0, %v1391
    %v1393 = vxor.u32 %v1321, 2147483648
    %v1394 = vmul.f32 %v1393, 1.442695
    %v1395 = vpow.pop %v1394
    %v1396 = vadd.f32 %v1395, 1.0
    %v1397 = vrcp.pop %v1396
    %v1398 = vmul.f32 %v1396, %v1397
    %v1399 = vsub.f32 1.0, %v1398
    %v1400 = vmul.f32 %v1397, %v1399
    %v1401 = vadd.f32 %v1397, %v1400
    %vm1402 = vweird.f32 %v1396
    %vm1403 = vweird.f32 %v1397
    %vm1404 = vmor %vm1402, %vm1403
    %v1405 = vsel %vm1404, %v1397, %v1401
    %v1406 = vand.u32 2147483647, %v1396
    %vm1407 = vcmp.eq.f32.partialorder %v1406, 8.507059e+37
    %v1408 = vand.u32 %v1396, 2147483648
    %v1409 = vor.u32 1.1754944e-38, %v1408
    %v1410 = vsel %vm1407, %v1409, %v1405
    %v1411 = vmul.f32 1.0, %v1410
    %v1412 = vtanh.pop %v1347
    %v1413 = vxor.u32 %v1373, 2147483648
    %v1414 = vmul.f32 %v1413, 1.442695
    %v1415 = vpow.pop %v1414
    %v1416 = vadd.f32 %v1415, 1.0
    %v1417 = vrcp.pop %v1416
    %v1418 = vmul.f32 %v1416, %v1417
    %v1419 = vsub.f32 1.0, %v1418
    %v1420 = vmul.f32 %v1417, %v1419
    %v1421 = vadd.f32 %v1417, %v1420
    %vm1422 = vweird.f32 %v1416
    %vm1423 = vweird.f32 %v1417
    %vm1424 = vmor %vm1422, %vm1423
    %v1425 = vsel %vm1424, %v1417, %v1421
    %v1426 = vand.u32 2147483647, %v1416
    %vm1427 = vcmp.eq.f32.partialorder %v1426, 8.507059e+37
    %v1428 = vand.u32 %v1416, 2147483648
    %v1429 = vor.u32 1.1754944e-38, %v1428
    %v1430 = vsel %vm1427, %v1429, %v1425
    %v1431 = vmul.f32 1.0, %v1430
    %v1433 = vrot.slane %v1255, 6
    %v1435 = vmul.f32 %v1411, %v1433
    %1437 = vrot.lane.b32.xlu0 %v1412, 64
    %v1438 = vpop.permute.xlu0 %1437
    %v1440 = vmul.f32 %v1392, %v1438
    %1442 = vrot.lane.b32.xlu0 %v1440, 32
    %v1443 = vpop.permute.xlu0 %1442
    %v1445 = vadd.f32 %v1435, %v1443
    %v1446 = vtanh.pop %v1445
    %1448 = vrot.lane.b32.xlu0 %v1446, 64
    %v1449 = vpop.permute.xlu0 %1448
    %v1451 = vmul.f32 %v1431, %v1449
    %1453 = vrot.lane.b32.xlu0 %v1451, 32
    %v1454 = vpop.permute.xlu0 %1453
    %1456 = vst.msk [vmem:[#allocation2 + $0x8] sm:$0x30] %vm703, %v1454
    %v1457 = vrot.slane %v1451, 4
    %1458 = vrot.lane.b32.xlu0 %v1457, 32
    %v1459 = vpop.permute.xlu0 %1458
    %v1460 = vsel %vm105, %v1459, 0
    %1462 = vmatpush.msra.mxu0 0.0
    %1463 = vmatpush.msra.mxu0 0.0
    %1464 = vmatpush.msra.mxu0 0.0
    %1465 = vmatpush.msra.mxu0 0.0
    %1466 = vmatpush.msra.mxu0 0.0
    %1467 = vmatpush.msra.mxu0 0.0
    %1468 = vmatpush.msra.mxu0 0.0
    %1469 = vmatpush.msra.mxu0 0.0
    %1470 = vmatpush.msra.mxu0 0.0
    %1471 = vmatpush.msra.mxu0 0.0
    %1472 = vmatpush.msra.mxu0 0.0
    %1473 = vmatpush.msra.mxu0 0.0
    %1474 = vmatpush.msra.mxu0 %v104
    %1475 = vmatpush.msra.mxu0 %v103
    %1476 = vmatpush.msra.mxu0 %v102
    %1477 = vmatpush.msra.mxu0 %v101
    %1478 = vmatmul.f32.gmra.mxu0 %v1460
    %v1479 = vpop.f32.mrf.mxu0
    %v1480 = vadd.f32 0.0, %v1479
    %1481 = vdwg.mxu0
    %v1483 = vrot.slane %v1480, 2
    %v1485 = vadd.f32 %v99, %v1483
    %1486 = vmatpush.msra.mxu0 0.0
    %1487 = vmatpush.msra.mxu0 0.0
    %1488 = vmatpush.msra.mxu0 0.0
    %1489 = vmatpush.msra.mxu0 0.0
    %1490 = vmatpush.msra.mxu0 0.0
    %1491 = vmatpush.msra.mxu0 0.0
    %1492 = vmatpush.msra.mxu0 0.0
    %1493 = vmatpush.msra.mxu0 0.0
    %1494 = vmatpush.msra.mxu0 0.0
    %1495 = vmatpush.msra.mxu0 0.0
    %1496 = vmatpush.msra.mxu0 0.0
    %1497 = vmatpush.msra.mxu0 0.0
    %1498 = vmatpush.msra.mxu0 %v141
    %1499 = vmatpush.msra.mxu0 %v139
    %1500 = vmatpush.msra.mxu0 %v137
    %1501 = vmatpush.msra.mxu0 %v135
    %1502 = vmatmul.f32.gmra.mxu0 %v1460
    %v1503 = vpop.f32.mrf.mxu0
    %v1504 = vadd.f32 0.0, %v1503
    %1505 = vdwg.mxu0
    %v1507 = vrot.slane %v1504, 2
    %1508 = vrot.lane.b32.xlu0 %v1507, 32
    %v1509 = vpop.permute.xlu0 %1508
    %v1511 = vadd.f32 %v99, %v1509
    %1512 = vmatpush.msra.mxu0 0.0
    %1513 = vmatpush.msra.mxu0 0.0
    %1514 = vmatpush.msra.mxu0 0.0
    %1515 = vmatpush.msra.mxu0 0.0
    %1516 = vmatpush.msra.mxu0 0.0
    %1517 = vmatpush.msra.mxu0 0.0
    %1518 = vmatpush.msra.mxu0 0.0
    %1519 = vmatpush.msra.mxu0 0.0
    %1520 = vmatpush.msra.mxu0 0.0
    %1521 = vmatpush.msra.mxu0 0.0
    %1522 = vmatpush.msra.mxu0 0.0
    %1523 = vmatpush.msra.mxu0 0.0
    %1524 = vmatpush.msra.mxu0 %v178
    %1525 = vmatpush.msra.mxu0 %v176
    %1526 = vmatpush.msra.mxu0 %v174
    %1527 = vmatpush.msra.mxu0 %v172
    %1528 = vmatmul.f32.gmra.mxu0 %v1460
    %v1529 = vpop.f32.mrf.mxu0
    %v1530 = vadd.f32 0.0, %v1529
    %1531 = vdwg.mxu0
    %v1533 = vrot.slane %v1530, 2
    %1534 = vrot.lane.b32.xlu0 %v1533, 64
    %v1535 = vpop.permute.xlu0 %1534
    %v1537 = vadd.f32 %v99, %v1535
    %1538 = vmatpush.msra.mxu0 0.0
    %1539 = vmatpush.msra.mxu0 0.0
    %1540 = vmatpush.msra.mxu0 0.0
    %1541 = vmatpush.msra.mxu0 0.0
    %1542 = vmatpush.msra.mxu0 0.0
    %1543 = vmatpush.msra.mxu0 0.0
    %1544 = vmatpush.msra.mxu0 0.0
    %1545 = vmatpush.msra.mxu0 0.0
    %1546 = vmatpush.msra.mxu0 0.0
    %1547 = vmatpush.msra.mxu0 0.0
    %1548 = vmatpush.msra.mxu0 0.0
    %1549 = vmatpush.msra.mxu0 0.0
    %1550 = vmatpush.msra.mxu0 %v215
    %1551 = vmatpush.msra.mxu0 %v213
    %1552 = vmatpush.msra.mxu0 %v211
    %1553 = vmatpush.msra.mxu0 %v209
    %1554 = vmatmul.f32.gmra.mxu0 %v1460
    %v1555 = vpop.f32.mrf.mxu0
    %v1556 = vadd.f32 0.0, %v1555
    %1557 = vdwg.mxu0
    %v1559 = vrot.slane %v1556, 2
    %1560 = vrot.lane.b32.xlu0 %v1559, 96
    %v1561 = vpop.permute.xlu0 %1560
    %v1563 = vadd.f32 %v99, %v1561
    %v1564 = vxor.u32 %v1485, 2147483648
    %v1565 = vmul.f32 %v1564, 1.442695
    %v1566 = vpow.pop %v1565
    %v1567 = vadd.f32 %v1566, 1.0
    %v1568 = vrcp.pop %v1567
    %v1569 = vmul.f32 %v1567, %v1568
    %v1570 = vsub.f32 1.0, %v1569
    %v1571 = vmul.f32 %v1568, %v1570
    %v1572 = vadd.f32 %v1568, %v1571
    %vm1573 = vweird.f32 %v1567
    %vm1574 = vweird.f32 %v1568
    %vm1575 = vmor %vm1573, %vm1574
    %v1576 = vsel %vm1575, %v1568, %v1572
    %v1577 = vand.u32 2147483647, %v1567
    %vm1578 = vcmp.eq.f32.partialorder %v1577, 8.507059e+37
    %v1579 = vand.u32 %v1567, 2147483648
    %v1580 = vor.u32 1.1754944e-38, %v1579
    %v1581 = vsel %vm1578, %v1580, %v1576
    %v1582 = vmul.f32 1.0, %v1581
    %v1583 = vxor.u32 %v1511, 2147483648
    %v1584 = vmul.f32 %v1583, 1.442695
    %v1585 = vpow.pop %v1584
    %v1586 = vadd.f32 %v1585, 1.0
    %v1587 = vrcp.pop %v1586
    %v1588 = vmul.f32 %v1586, %v1587
    %v1589 = vsub.f32 1.0, %v1588
    %v1590 = vmul.f32 %v1587, %v1589
    %v1591 = vadd.f32 %v1587, %v1590
    %vm1592 = vweird.f32 %v1586
    %vm1593 = vweird.f32 %v1587
    %vm1594 = vmor %vm1592, %vm1593
    %v1595 = vsel %vm1594, %v1587, %v1591
    %v1596 = vand.u32 2147483647, %v1586
    %vm1597 = vcmp.eq.f32.partialorder %v1596, 8.507059e+37
    %v1598 = vand.u32 %v1586, 2147483648
    %v1599 = vor.u32 1.1754944e-38, %v1598
    %v1600 = vsel %vm1597, %v1599, %v1595
    %v1601 = vmul.f32 1.0, %v1600
    %v1602 = vtanh.pop %v1537
    %v1603 = vxor.u32 %v1563, 2147483648
    %v1604 = vmul.f32 %v1603, 1.442695
    %v1605 = vpow.pop %v1604
    %v1606 = vadd.f32 %v1605, 1.0
    %v1607 = vrcp.pop %v1606
    %v1608 = vmul.f32 %v1606, %v1607
    %v1609 = vsub.f32 1.0, %v1608
    %v1610 = vmul.f32 %v1607, %v1609
    %v1611 = vadd.f32 %v1607, %v1610
    %vm1612 = vweird.f32 %v1606
    %vm1613 = vweird.f32 %v1607
    %vm1614 = vmor %vm1612, %vm1613
    %v1615 = vsel %vm1614, %v1607, %v1611
    %v1616 = vand.u32 2147483647, %v1606
    %vm1617 = vcmp.eq.f32.partialorder %v1616, 8.507059e+37
    %v1618 = vand.u32 %v1606, 2147483648
    %v1619 = vor.u32 1.1754944e-38, %v1618
    %v1620 = vsel %vm1617, %v1619, %v1615
    %v1621 = vmul.f32 1.0, %v1620
    %v1623 = vrot.slane %v1445, 6
    %v1625 = vmul.f32 %v1601, %v1623
    %1627 = vrot.lane.b32.xlu0 %v1602, 64
    %v1628 = vpop.permute.xlu0 %1627
    %v1630 = vmul.f32 %v1582, %v1628
    %1632 = vrot.lane.b32.xlu0 %v1630, 32
    %v1633 = vpop.permute.xlu0 %1632
    %v1635 = vadd.f32 %v1625, %v1633
    %v1636 = vtanh.pop %v1635
    %1638 = vrot.lane.b32.xlu0 %v1636, 64
    %v1639 = vpop.permute.xlu0 %1638
    %v1641 = vmul.f32 %v1621, %v1639
    %1643 = vrot.lane.b32.xlu0 %v1641, 32
    %v1644 = vpop.permute.xlu0 %1643
    %1646 = vst.msk [vmem:[#allocation2 + $0x8] sm:$0xc0] %vm894, %v1644
    %v1647 = vld [vmem:[#allocation2] sm:$0xff]
    %v1648 = vld [vmem:[#allocation2 + $0x8] sm:$0xff]
    %v1649 = vsel %vm105, %v1647, 0.0
    %1650 = vadd.xlane.f32.xlu0 %v1649
    %v1651 = vpop.xlane.xlu0 %1650
    %v1652 = vsel %vm105, %v1648, 0.0
    %1653 = vadd.xlane.f32.xlu0 %v1652
    %v1654 = vpop.xlane.xlu0 %1653
    %v1655 = vrcp.pop 32.0
    %v1656 = vmul.f32 32.0, %v1655
    %v1657 = vsub.f32 1.0, %v1656
    %v1658 = vmul.f32 %v1655, %v1657
    %v1659 = vadd.f32 %v1655, %v1658
    %vm1660 = vweird.f32 %v1655
    %v1661 = vsel %vm1660, %v1655, %v1659
    %v1662 = vmul.f32 %v1651, %v1661
    %v1663 = vmul.f32 %v1654, %v1661
    %v1664 = vsub.f32 %v1647, %v1662
    %v1665 = vsub.f32 %v1648, %v1663
    %v1666 = vmul.f32 %v1664, %v1664
    %v1667 = vmul.f32 %v1665, %v1665
    %v1668 = vsel %vm105, %v1666, 0.0
    %1669 = vadd.xlane.f32.xlu0 %v1668
    %v1670 = vpop.xlane.xlu0 %1669
    %v1671 = vsel %vm105, %v1667, 0.0
    %1672 = vadd.xlane.f32.xlu0 %v1671
    %v1673 = vpop.xlane.xlu0 %1672
    %v1674 = vmul.f32 %v1670, %v1661
    %v1675 = vmul.f32 %v1673, %v1661
    %v1676 = vadd.f32 %v1674, 1e-05
    %v1677 = vadd.f32 %v1675, 1e-05
    %v1678 = vrsqrt.pop %v1676
    %v1679 = vmul.f32 %v1678, %v1676
    %v1680 = vmul.f32 %v1679, %v1678
    %v1681 = vmul.f32 0.5, %v1680
    %v1682 = vsub.f32 1.5, %v1681
    %v1683 = vmul.f32 %v1678, %v1682
    %vm1684 = vweird.f32 %v1676
    %vm1685 = vweird.f32 %v1678
    %vm1686 = vmor %vm1684, %vm1685
    %v1687 = vsel %vm1686, %v1678, %v1683
    %v1688 = vrsqrt.pop %v1677
    %v1689 = vmul.f32 %v1688, %v1677
    %v1690 = vmul.f32 %v1689, %v1688
    %v1691 = vmul.f32 0.5, %v1690
    %v1692 = vsub.f32 1.5, %v1691
    %v1693 = vmul.f32 %v1688, %v1692
    %vm1694 = vweird.f32 %v1677
    %vm1695 = vweird.f32 %v1688
    %vm1696 = vmor %vm1694, %vm1695
    %v1697 = vsel %vm1696, %v1688, %v1693
    %v1698 = vmul.f32 %v1664, %v1687
    %v1699 = vmul.f32 %v1665, %v1697
    %v1701 = vperm.slane %v64, 0
    %v1703 = vmul.f32 %v1698, %v1701
    %v1704 = vmul.f32 %v1699, %v1701
    %v1706 = vperm.slane %v65, 0
    %v1708 = vadd.f32 %v1703, %v1706
    %v1709 = vadd.f32 %v1704, %v1706
    %v1710 = vld [vmem:[%s6] sm:$0xff]
    %v1711 = vld [vmem:[%s6 + $0x8] sm:$0xff]
    %v1712 = vld [vmem:[%s6 + $0x10] sm:$0xff]
    %v1713 = vld [vmem:[%s6 + $0x18] sm:$0xff]
    %v1714 = vld [vmem:[%s7] sm:$0x1]
    %v1716 = vperm.slane %v1714, 0
    %v1719 = vsel %vm105, %v1708, 0
    %v1722 = vsel %vm105, %v1709, 0
    %1724 = vmatpush.msra.mxu0 0.0
    %1725 = vmatpush.msra.mxu0 0.0
    %1726 = vmatpush.msra.mxu0 0.0
    %1727 = vmatpush.msra.mxu0 0.0
    %1728 = vmatpush.msra.mxu0 0.0
    %1729 = vmatpush.msra.mxu0 0.0
    %1730 = vmatpush.msra.mxu0 0.0
    %1731 = vmatpush.msra.mxu0 0.0
    %1732 = vmatpush.msra.mxu0 0.0
    %1733 = vmatpush.msra.mxu0 0.0
    %1734 = vmatpush.msra.mxu0 0.0
    %1735 = vmatpush.msra.mxu0 0.0
    %1736 = vmatpush.msra.mxu0 %v1713
    %1737 = vmatpush.msra.mxu0 %v1712
    %1738 = vmatpush.msra.mxu0 %v1711
    %1739 = vmatpush.msra.mxu0 %v1710
    %1740 = vmatmul.f32.gmra.mxu0 %v1719
    %v1741 = vpop.f32.mrf.mxu0
    %v1742 = vadd.f32 %v1716, %v1741
    %1743 = vmatmul.f32.gmra.mxu0 %v1722
    %v1744 = vpop.f32.mrf.mxu0
    %v1745 = vadd.f32 %v1716, %v1744
    %1746 = vdwg.mxu0
    %v1747 = vxor.u32 %v1742, 2147483648
    %v1748 = vxor.u32 %v1745, 2147483648
    %v1749 = vmul.f32 %v1747, 1.442695
    %v1750 = vpow.pop %v1749
    %v1751 = vmul.f32 %v1748, 1.442695
    %v1752 = vpow.pop %v1751
    %v1753 = vadd.f32 %v1750, 1.0
    %v1754 = vadd.f32 %v1752, 1.0
    %v1755 = vrcp.pop %v1753
    %v1756 = vmul.f32 %v1753, %v1755
    %v1757 = vsub.f32 1.0, %v1756
    %v1758 = vmul.f32 %v1755, %v1757
    %v1759 = vadd.f32 %v1755, %v1758
    %vm1760 = vweird.f32 %v1753
    %vm1761 = vweird.f32 %v1755
    %vm1762 = vmor %vm1760, %vm1761
    %v1763 = vsel %vm1762, %v1755, %v1759
    %v1764 = vand.u32 2147483647, %v1753
    %vm1765 = vcmp.eq.f32.partialorder %v1764, 8.507059e+37
    %v1766 = vand.u32 %v1753, 2147483648
    %v1767 = vor.u32 1.1754944e-38, %v1766
    %v1768 = vsel %vm1765, %v1767, %v1763
    %v1769 = vmul.f32 1.0, %v1768
    %v1770 = vrcp.pop %v1754
    %v1771 = vmul.f32 %v1754, %v1770
    %v1772 = vsub.f32 1.0, %v1771
    %v1773 = vmul.f32 %v1770, %v1772
    %v1774 = vadd.f32 %v1770, %v1773
    %vm1775 = vweird.f32 %v1754
    %vm1776 = vweird.f32 %v1770
    %vm1777 = vmor %vm1775, %vm1776
    %v1778 = vsel %vm1777, %v1770, %v1774
    %v1779 = vand.u32 2147483647, %v1754
    %vm1780 = vcmp.eq.f32.partialorder %v1779, 8.507059e+37
    %v1781 = vand.u32 %v1754, 2147483648
    %v1782 = vor.u32 1.1754944e-38, %v1781
    %v1783 = vsel %vm1780, %v1782, %v1778
    %v1784 = vmul.f32 1.0, %v1783
    %vm1785 = vcmask 31744
    %1786 = vst.msk [vmem:[%s8] sm:$0xff] %vm1785, %v1769
    %1787 = vst.msk [vmem:[%s8 + $0x8] sm:$0xff] %vm1785, %v1784
    // Predicated region
    $region42: #{tpu_custom_call.1} parent=1 // pred_check
      _
    $region43: #{tpu_custom_call.1} parent=1 // pred_check_branch
      %1789 = sbr.rel (0) target = $region45
    $region44: #{tpu_custom_call.1} parent=1 // pred_region
      _
    $region45: #{tpu_custom_call.1} parent=1 // pred_fallthru
      _
    // Predicated region
    $region46: #{tpu_custom_call.1} parent=1 // pred_check
      _
    $region47: #{tpu_custom_call.1} parent=1 // pred_check_branch
      %1791 = sbr.rel (0) target = $region49
    $region48: #{tpu_custom_call.1} parent=1 // pred_region
      _
    $region49: #{tpu_custom_call.1} parent=1 // pred_fallthru
      _
    %1792 = vsyncpa [#allocation4], 1
    %1793 = vsyncpa [#allocation6], 1

</llo_original>
